<compile_context>
chip_gen: v6e
topology: v6e:2x2x1
jax: 0.10.0
libtpu: 0.0.40
codegen_flags: <defaults>
</compile_context>

<pallas_src>
import math

import jax
import jax.numpy as jnp
import numpy as np
from jax.experimental import pallas as pl
from jax.experimental.pallas import tpu as pltpu


# ----------------------- host-side constant factor builders -----------------

def _conv_col_cat(w, w_in, stride, pad, ci_pad, co_pad):
    """Conv2d weight [Co,Ci,k,k] -> Mcat [k*w_in*ci_pad, w_out*co_pad].

    Maps the lane-concatenation of the k row-tap slabs (channels-fastest
    layout, ci padded to ci_pad) to output columns (co padded to co_pad).
    Column zero-padding is folded in by skipping out-of-range columns.
    """
    co, ci, k, _ = w.shape
    w_out = (w_in + 2 * pad - k) // stride + 1
    m = np.zeros((k, w_in * ci_pad, w_out * co_pad), np.float32)
    for kh in range(k):
        for kw in range(k):
            for j in range(w_out):
                wc = stride * j + kw - pad
                if 0 <= wc < w_in:
                    m[kh, wc * ci_pad:wc * ci_pad + ci,
                      j * co_pad:j * co_pad + co] += w[:, :, kh, kw].T
    return m.reshape(k * w_in * ci_pad, w_out * co_pad), w_out


def _deconv_col(wt, w_in, stride, pad, out_pad, ci_pad, co_pad):
    """ConvTranspose2d weight [Ci,Co,k,k] -> per-kh column maps
    [k, w_in*ci_pad, w_out*co_pad] (q = stride*j + kw - pad)."""
    ci, co, k, _ = wt.shape
    w_out = (w_in - 1) * stride - 2 * pad + k + out_pad
    m = np.zeros((k, w_in * ci_pad, w_out * co_pad), np.float32)
    for kh in range(k):
        for kw in range(k):
            for j in range(w_in):
                q = stride * j + kw - pad
                if 0 <= q < w_out:
                    m[kh, j * ci_pad:j * ci_pad + ci,
                      q * co_pad:q * co_pad + co] += wt[:, :, kh, kw]
    return m, w_out


def _bn_affine(bias, gamma, beta, mean, var, w_out, co_pad, eps=1e-5):
    """Conv bias folded into eval-mode BN, tiled to the (w, co_pad) lane layout.
    Padded channel slots get scale=0, shift=0 (so ReLU leaves them at 0)."""
    co = gamma.shape[0]
    scale = gamma / np.sqrt(var + eps)
    shift = bias * scale + (beta - mean * scale)
    s = np.zeros((w_out * co_pad,), np.float32)
    t = np.zeros_like(s)
    for j in range(w_out):
        s[j * co_pad:j * co_pad + co] = scale
        t[j * co_pad:j * co_pad + co] = shift
    return s, t


def build_conv_alpha_consts(params, H, W):
    """Host-side (NumPy) constant preparation, done once per parameter set."""
    p = {k: np.asarray(v, np.float32) for k, v in params.items()}
    Chid, Cin = p["enc_w"].shape[:2]
    Cout = p["cb_w"].shape[0]
    assert H % 2 == 0 and W % 2 == 0, "kernel assumes even spatial dims"
    He, We = H // 2, W // 2
    Wd = W
    G = p["gw1"].shape[1]

    def lane_pad(c, wout):
        q = 128 // math.gcd(wout, 128)
        cp = int(-(-c // q) * q)
        return cp if cp <= max(2 * c, c + 32) else c

    Chid_p = lane_pad(Chid, We)     # encoder output channels (lane-dense)
    Cmid_p = lane_pad(Cin, Wd)      # decoder output channels (lane-dense)

    me, we2 = _conv_col_cat(p["enc_w"], W, 2, 1, Cin, Chid_p)
    assert we2 == We
    md, wd2 = _deconv_col(p["dec_w"], We, 2, 1, 1, Chid_p, Cmid_p)
    assert wd2 == Wd
    mc, wc2 = _conv_col_cat(p["cb_w"], Wd, 1, 1, Cmid_p, Cout)
    assert wc2 == Wd
    mde = md[1]                                     # even output rows (kh=1)
    mdo = np.concatenate([md[0], md[2]], axis=0)    # odd rows: [enc[m+1]|enc[m]]

    se, te = _bn_affine(p["enc_b"], p["enc_g"], p["enc_be"], p["enc_m"],
                        p["enc_v"], We, Chid_p)
    sd, td = _bn_affine(p["dec_b"], p["dec_g"], p["dec_be"], p["dec_m"],
                        p["dec_v"], Wd, Cmid_p)
    sc, tc = _bn_affine(p["cb_b"], p["cb_g"], p["cb_be"], p["cb_m"],
                        p["cb_v"], Wd, Cout)

    # Gate MLP: fold the average pool into the first matrix (channels-fastest).
    g1 = np.tile(p["gw1"], (W, 1)) / float(H * W)   # [W*Cin, G]

    # Pack all small affine / bias vectors into one (8, 128k) slab.
    widths = [se.size, sd.size, sc.size, G + 1]
    wmax = int(-(-max(max(widths), 128) // 128) * 128)
    aff = np.zeros((8, wmax), np.float32)
    aff[0, :se.size] = se
    aff[1, :te.size] = te
    aff[2, :sd.size] = sd
    aff[3, :td.size] = td
    aff[4, :sc.size] = sc
    aff[5, :tc.size] = tc
    aff[6, :G] = p["gb1"].reshape(-1)
    aff[6, G] = p["gb2"].reshape(-1)[0]
    aff[7, :G] = p["gw2"].reshape(-1)

    bf = jnp.bfloat16
    return dict(
        me=jnp.asarray(me, bf), mde=jnp.asarray(mde, bf),
        mdo=jnp.asarray(mdo, bf), mc=jnp.asarray(mc, bf),
        g1=jnp.asarray(g1, jnp.float32), aff=jnp.asarray(aff, jnp.float32),
    )


# ------------------------------ Pallas kernel --------------------------------

def _make_conv_alpha_kernel(TB, He, WC, Chid_w, Cmid_w, Cout_w, G):
    Hc = 2 * He
    f32, bf16 = jnp.float32, jnp.bfloat16

    def kernel(x_ref, g1_ref, me_ref, mde_ref, mdo_ref, mc_ref, aff_ref, o_ref):
        x = x_ref[...]                              # [TB, 2, Hp2, WC] bf16
        aff = aff_ref[...]                          # [8, Wmax] f32
        se, te = aff[0:1, :Chid_w], aff[1:2, :Chid_w]
        sd, td = aff[2:3, :Cmid_w], aff[3:4, :Cmid_w]
        sc, tc = aff[4:5, :Cout_w], aff[5:6, :Cout_w]
        gb1 = aff[6:7, :G]
        gb2 = aff[6:7, G:G + 1]
        gw2 = aff[7:8, :G]

        # --- GateDenoise: avg-pool (XLU reduce) -> fc -> ReLU -> fc -> sigmoid
        Hp2 = x.shape[2]
        colsum = jnp.sum(x.astype(f32).reshape(TB, 2 * Hp2, WC), axis=1)  # [TB, WC]
        h = jnp.maximum(
            jnp.dot(colsum, g1_ref[...], preferred_element_type=f32) + gb1, 0.0)
        z = jnp.sum(h * gw2, axis=-1, keepdims=True) + gb2               # [TB, 1]
        gate = 1.0 / (1.0 + jnp.exp(-z))                                 # EUP

        # --- Encoder: stride-2 3x3 conv + BN + ReLU (Dropout2d identity, eval)
        xe, xo = x[:, 0], x[:, 1]                   # even / odd padded rows
        enc_in = jnp.concatenate(
            [xe[:, 0:He, :], xo[:, 0:He, :], xe[:, 1:He + 1, :]], axis=-1
        ).reshape(TB * He, 3 * WC)                  # [TB*He, 3*W*Cin] bf16
        enc_acc = jnp.dot(enc_in, me_ref[...],
                          preferred_element_type=f32).reshape(TB, He, Chid_w)
        # conv(gate*x) == gate*conv(x): fold the per-image gate into BN scale.
        enc = jnp.maximum(enc_acc * (se * gate[:, :, None]) + te, 0.0)
        enc = enc.astype(bf16)                      # [TB, He, We*Chid_p]

        # --- Decoder: stride-2 ConvTranspose + BN + ReLU (even/odd row split)
        zc = jnp.zeros((TB, 1, Chid_w), bf16)
        enc_up = jnp.concatenate([enc[:, 1:, :], zc], axis=1)        # enc[m+1]
        even_acc = jnp.dot(enc.reshape(TB * He, Chid_w), mde_ref[...],
                           preferred_element_type=f32)
        odd_in = jnp.concatenate([enc_up, enc],
                                 axis=-1).reshape(TB * He, 2 * Chid_w)
        odd_acc = jnp.dot(odd_in, mdo_ref[...], preferred_element_type=f32)
        dec_e = jnp.maximum(even_acc.reshape(TB, He, Cmid_w) * sd + td,
                            0.0).astype(bf16)
        dec_o = jnp.maximum(odd_acc.reshape(TB, He, Cmid_w) * sd + td,
                            0.0).astype(bf16)

        # --- Final ConvBlock: stride-1 3x3 conv + BN + ReLU, computed directly
        # in even/odd output-row form (rows un-split by the XLA wrapper).
        zm = jnp.zeros((TB, 1, Cmid_w), bf16)
        o_dn = jnp.concatenate([zm, dec_o[:, :He - 1, :]], axis=1)   # dec_o[m-1]
        e_up = jnp.concatenate([dec_e[:, 1:, :], zm], axis=1)        # dec_e[m+1]
        ev_in = jnp.concatenate([o_dn, dec_e, dec_o], axis=-1)       # rows 2m
        od_in = jnp.concatenate([dec_e, dec_o, e_up], axis=-1)       # rows 2m+1
        all_in = jnp.concatenate([ev_in, od_in],
                                 axis=1).reshape(TB * Hc, 3 * Cmid_w)
        cb_acc = jnp.dot(all_in, mc_ref[...], preferred_element_type=f32)
        out = jnp.maximum(cb_acc.reshape(TB, Hc, Cout_w) * sc + tc, 0.0)
        o_ref[...] = out

    return kernel


# ------------------------------- JAX wrapper ---------------------------------

def _pick_tb(batch):
    """Images per grid step: as big as reasonable, but keep >=2 grid steps so
    the 'parallel' batch axis shards across v7x's two TensorCores."""
    cap = max(1, min(8, batch // 2))
    for d in range(cap, 0, -1):
        if batch % d == 0:
            return d
    return 1


def conv_alpha_block(x_nchw, consts):
    """Full ConvAlphaBlock forward (eval mode).  x_nchw: [B, Cin, H, W]."""
    B, Cin, H, W = x_nchw.shape
    assert H % 2 == 0 and W % 2 == 0
    WC = W * Cin
    Hp2 = H // 2 + 1
    He = H // 2
    Hc = H
    Chid_w = consts["me"].shape[1]
    Cmid_w = consts["mde"].shape[1]
    Cout_w = consts["mc"].shape[1]
    G = consts["g1"].shape[1]
    assert Cout_w % W == 0
    Cout = Cout_w // W
    TB = _pick_tb(B)

    # NCHW -> channels-fastest slab, one zero row of padding top/bottom, then
    # split rows into (even, odd) planes so all in-kernel row reads are
    # contiguous slices (no gather matmuls, no strided loads).
    x_slab = jnp.transpose(x_nchw, (0, 2, 3, 1)).reshape(B, H, WC)
    x_slab = jnp.pad(x_slab, ((0, 0), (1, 1), (0, 0)))
    x_split = x_slab.reshape(B, Hp2, 2, WC).transpose(0, 2, 1, 3)
    x_split = x_split.astype(jnp.bfloat16)

    kernel = _make_conv_alpha_kernel(TB, He, WC, Chid_w, Cmid_w, Cout_w, G)
    const_arrs = [consts[k] for k in ("g1", "me", "mde", "mdo", "mc", "aff")]

    out_split = pl.pallas_call(
        kernel,
        out_shape=jax.ShapeDtypeStruct((B, Hc, Cout_w), jnp.float32),
        grid_spec=pltpu.PrefetchScalarGridSpec(
            num_scalar_prefetch=0,
            grid=(B // TB,),
            in_specs=[pl.BlockSpec((TB, 2, Hp2, WC), lambda b: (b, 0, 0, 0))]
                     + [pl.BlockSpec(a.shape, lambda b: (0, 0))
                        for a in const_arrs],
            out_specs=pl.BlockSpec((TB, Hc, Cout_w), lambda b: (b, 0, 0)),
        ),
        compiler_params=pltpu.CompilerParams(
            dimension_semantics=("parallel",)),
        # NOTE: at larger shapes / TB, set vmem_limit_bytes here (smaller on
        # v7x, 64 MiB physical) and re-size TB accordingly.
    )(x_split, *const_arrs)

    # Kernel emits rows in (even | odd) split order; interleave back and emit
    # torch.flatten(NCHW, 1) ordering.
    out = out_split.reshape(B, 2, H // 2, W, Cout)
    out = out.transpose(0, 2, 1, 3, 4).reshape(B, H, W, Cout)
    return jnp.transpose(out, (0, 3, 1, 2)).reshape(B, -1)


# ------------------------- pure-JAX reference (check) ------------------------

def reference_forward(x_nchw, params, eps=1e-5):
    B = x_nchw.shape[0]
    hp = jax.lax.Precision.HIGHEST
    dn = ("NCHW", "OIHW", "NCHW")

    def bn(y, g, b, m, v):
        return ((y - m[None, :, None, None]) /
                jnp.sqrt(v[None, :, None, None] + eps) *
                g[None, :, None, None] + b[None, :, None, None])

    pooled = jnp.mean(x_nchw, axis=(2, 3))                       # [B, Cin]
    h = jnp.maximum(pooled @ params["gw1"] + params["gb1"], 0.0)
    gate = jax.nn.sigmoid(h @ params["gw2"] + params["gb2"])     # [B, 1]
    gated = x_nchw * gate[:, :, None, None]

    enc = jax.lax.conv_general_dilated(gated, params["enc_w"], (2, 2),
                                       ((1, 1), (1, 1)), dimension_numbers=dn,
                                       precision=hp)
    enc = jnp.maximum(bn(enc + params["enc_b"][None, :, None, None],
                         params["enc_g"], params["enc_be"],
                         params["enc_m"], params["enc_v"]), 0.0)

    w_flip = jnp.transpose(params["dec_w"][:, :, ::-1, ::-1], (1, 0, 2, 3))
    dec = jax.lax.conv_general_dilated(enc, w_flip, (1, 1), ((1, 2), (1, 2)),
                                       lhs_dilation=(2, 2),
                                       dimension_numbers=dn, precision=hp)
    dec = jnp.maximum(bn(dec + params["dec_b"][None, :, None, None],
                         params["dec_g"], params["dec_be"],
                         params["dec_m"], params["dec_v"]), 0.0)

    cb = jax.lax.conv_general_dilated(dec, params["cb_w"], (1, 1),
                                      ((1, 1), (1, 1)), dimension_numbers=dn,
                                      precision=hp)
    cb = jnp.maximum(bn(cb + params["cb_b"][None, :, None, None],
                        params["cb_g"], params["cb_be"],
                        params["cb_m"], params["cb_v"]), 0.0)
    return cb.reshape(B, -1)


# ----------------------------------- main ------------------------------------

if __name__ == "__main__":
    B, Cin, H, W = 2, 4, 16, 16
    Chid, Cout = 8, 8

    key = jax.random.PRNGKey(0)
    keys = jax.random.split(key, 20)

    def nrm(k, shape, scale=0.1):
        return scale * jax.random.normal(k, shape, jnp.float32)

    x_nchw = jax.random.normal(keys[0], (B, Cin, H, W), jnp.float32)

    params = {
        # GateDenoise: 1x1 convs stored as linear layers [Cin_fc, Cout_fc]
        "gw1": nrm(keys[1], (Cin, Cin // 2)),
        "gb1": nrm(keys[2], (1, Cin // 2)),
        "gw2": nrm(keys[3], (Cin // 2, 1)),
        "gb2": nrm(keys[4], (1, 1)),
        # Encoder: Conv2d(Cin, Chid, 3, stride=2, pad=1) + BN
        "enc_w": nrm(keys[5], (Chid, Cin, 3, 3)),
        "enc_b": nrm(keys[6], (Chid,)),
        "enc_g": 1.0 + nrm(keys[7], (Chid,)),
        "enc_be": nrm(keys[8], (Chid,)),
        "enc_m": jnp.zeros((Chid,), jnp.float32),
        "enc_v": jnp.ones((Chid,), jnp.float32),
        # Decoder: ConvTranspose2d(Chid, Cin, 3, stride=2, pad=1, out_pad=1)+BN
        "dec_w": nrm(keys[9], (Chid, Cin, 3, 3)),
        "dec_b": nrm(keys[10], (Cin,)),
        "dec_g": 1.0 + nrm(keys[11], (Cin,)),
        "dec_be": nrm(keys[12], (Cin,)),
        "dec_m": jnp.zeros((Cin,), jnp.float32),
        "dec_v": jnp.ones((Cin,), jnp.float32),
        # ConvBlock: Conv2d(Cin, Cout, 3, stride=1, pad=1) + BN
        "cb_w": nrm(keys[13], (Cout, Cin, 3, 3)),
        "cb_b": nrm(keys[14], (Cout,)),
        "cb_g": 1.0 + nrm(keys[15], (Cout,)),
        "cb_be": nrm(keys[16], (Cout,)),
        "cb_m": jnp.zeros((Cout,), jnp.float32),
        "cb_v": jnp.ones((Cout,), jnp.float32),
    }

    # Host-side constant prep: done ONCE per parameter set, outside the jit.
    consts = build_conv_alpha_consts(params, H, W)

    fwd = jax.jit(conv_alpha_block)
    out = jax.block_until_ready(fwd(x_nchw, consts))
    assert out.shape == (B, Cout * H * W), out.shape
    assert bool(jnp.all(jnp.isfinite(out)))

    ref = reference_forward(x_nchw, params)
    max_err = float(jnp.max(jnp.abs(out - ref)))
    assert max_err < 2e-2, f"mismatch vs reference: {max_err}"

    print("KERNEL_OK")
</pallas_src>

<mosaic_0001>
module attributes {stable_mosaic.version = 11 : i64} {
  func.func @kernel(%arg0: i32, %arg1: memref<1x2x9x64xbf16, #tpu.memory_space<vmem>>, %arg2: memref<64x2xf32, #tpu.memory_space<vmem>>, %arg3: memref<192x128xbf16, #tpu.memory_space<vmem>>, %arg4: memref<128x128xbf16, #tpu.memory_space<vmem>>, %arg5: memref<256x128xbf16, #tpu.memory_space<vmem>>, %arg6: memref<384x128xbf16, #tpu.memory_space<vmem>>, %arg7: memref<8x128xf32, #tpu.memory_space<vmem>>, %arg8: memref<1x16x128xf32, #tpu.memory_space<vmem>>) attributes {dimension_semantics = [#tpu.dimension_semantics<parallel>], iteration_bounds = array<i64: 2>, scalar_prefetch = 0 : i64, scratch_operands = 0 : i64, tpu.core_type = #tpu.core_type<tc>, window_params = [{transform_indices = @transform_0, window_bounds = array<i64: 1, 2, 9, 64>}, {pipeline_mode = #tpu.pipeline_mode<synchronous>, transform_indices = @transform_1, window_bounds = array<i64: 64, 2>}, {pipeline_mode = #tpu.pipeline_mode<synchronous>, transform_indices = @transform_2, window_bounds = array<i64: 192, 128>}, {pipeline_mode = #tpu.pipeline_mode<synchronous>, transform_indices = @transform_3, window_bounds = array<i64: 128, 128>}, {pipeline_mode = #tpu.pipeline_mode<synchronous>, transform_indices = @transform_4, window_bounds = array<i64: 256, 128>}, {pipeline_mode = #tpu.pipeline_mode<synchronous>, transform_indices = @transform_5, window_bounds = array<i64: 384, 128>}, {pipeline_mode = #tpu.pipeline_mode<synchronous>, transform_indices = @transform_6, window_bounds = array<i64: 8, 128>}, {transform_indices = @transform_7, window_bounds = array<i64: 1, 16, 128>}]} {
    %c0 = arith.constant 0 : index
    %c0_0 = arith.constant 0 : index
    %c0_1 = arith.constant 0 : index
    %c0_2 = arith.constant 0 : index
    %0 = vector.load %arg1[%c0, %c0_0, %c0_1, %c0_2] : memref<1x2x9x64xbf16, #tpu.memory_space<vmem>>, vector<1x2x9x64xbf16>
    %c0_3 = arith.constant 0 : index
    %c0_4 = arith.constant 0 : index
    %1 = vector.load %arg7[%c0_3, %c0_4] : memref<8x128xf32, #tpu.memory_space<vmem>>, vector<8x128xf32>
    %2 = vector.extract_strided_slice %1 {offsets = [0, 0], sizes = [1, 128], strides = [1, 1]} : vector<8x128xf32> to vector<1x128xf32>
    %3 = vector.extract_strided_slice %1 {offsets = [1, 0], sizes = [1, 128], strides = [1, 1]} : vector<8x128xf32> to vector<1x128xf32>
    %4 = vector.extract_strided_slice %1 {offsets = [2, 0], sizes = [1, 128], strides = [1, 1]} : vector<8x128xf32> to vector<1x128xf32>
    %5 = vector.extract_strided_slice %1 {offsets = [3, 0], sizes = [1, 128], strides = [1, 1]} : vector<8x128xf32> to vector<1x128xf32>
    %6 = vector.extract_strided_slice %1 {offsets = [4, 0], sizes = [1, 128], strides = [1, 1]} : vector<8x128xf32> to vector<1x128xf32>
    %7 = vector.extract_strided_slice %1 {offsets = [5, 0], sizes = [1, 128], strides = [1, 1]} : vector<8x128xf32> to vector<1x128xf32>
    %8 = vector.extract_strided_slice %1 {offsets = [6, 0], sizes = [1, 2], strides = [1, 1]} : vector<8x128xf32> to vector<1x2xf32>
    %9 = vector.extract_strided_slice %1 {offsets = [6, 2], sizes = [1, 1], strides = [1, 1]} : vector<8x128xf32> to vector<1x1xf32>
    %10 = vector.extract_strided_slice %1 {offsets = [7, 0], sizes = [1, 2], strides = [1, 1]} : vector<8x128xf32> to vector<1x2xf32>
    %11 = arith.extf %0 : vector<1x2x9x64xbf16> to vector<1x2x9x64xf32>
    %12 = vector.shape_cast %11 : vector<1x2x9x64xf32> to vector<1x18x64xf32>
    %cst = arith.constant dense<0.000000e+00> : vector<1x64xf32>
    %13 = vector.multi_reduction <add>, %12, %cst [1] : vector<1x18x64xf32> to vector<1x64xf32>
    %c0_5 = arith.constant 0 : index
    %c0_6 = arith.constant 0 : index
    %14 = vector.load %arg2[%c0_5, %c0_6] : memref<64x2xf32, #tpu.memory_space<vmem>>, vector<64x2xf32>
    %cst_7 = arith.constant dense<0.000000e+00> : vector<1x2xf32>
    %15 = tpu.matmul %13, %14, %cst_7 {dimension_numbers = #tpu.dot_dimension_numbers<[1], [0], [0], [1], [0, 0, 1, 1], [], []>} : vector<1x64xf32>, vector<64x2xf32>, vector<1x2xf32> -> vector<1x2xf32>
    %16 = arith.addf %15, %8 : vector<1x2xf32>
    %cst_8 = arith.constant 0.000000e+00 : f32
    %17 = vector.broadcast %cst_8 : f32 to vector<1x2xf32>
    %18 = arith.maximumf %16, %17 : vector<1x2xf32>
    %19 = arith.mulf %18, %10 : vector<1x2xf32>
    %cst_9 = arith.constant dense<0.000000e+00> : vector<1xf32>
    %20 = vector.multi_reduction <add>, %19, %cst_9 [1] : vector<1x2xf32> to vector<1xf32>
    %21 = vector.shape_cast %20 : vector<1xf32> to vector<1x1xf32>
    %22 = arith.addf %21, %9 : vector<1x1xf32>
    %cst_10 = arith.constant 0.000000e+00 : f32
    %23 = vector.broadcast %cst_10 : f32 to vector<1x1xf32>
    %24 = arith.subf %23, %22 : vector<1x1xf32>
    %25 = math.exp %24 : vector<1x1xf32>
    %cst_11 = arith.constant 1.000000e+00 : f32
    %26 = vector.broadcast %cst_11 : f32 to vector<1x1xf32>
    %27 = arith.addf %26, %25 : vector<1x1xf32>
    %cst_12 = arith.constant 1.000000e+00 : f32
    %28 = vector.broadcast %cst_12 : f32 to vector<1x1xf32>
    %29 = arith.divf %28, %27 : vector<1x1xf32>
    %30 = vector.extract_strided_slice %0 {offsets = [0, 0, 0, 0], sizes = [1, 1, 9, 64], strides = [1, 1, 1, 1]} : vector<1x2x9x64xbf16> to vector<1x1x9x64xbf16>
    %31 = vector.shape_cast %30 : vector<1x1x9x64xbf16> to vector<1x9x64xbf16>
    %32 = vector.extract_strided_slice %0 {offsets = [0, 1, 0, 0], sizes = [1, 1, 9, 64], strides = [1, 1, 1, 1]} : vector<1x2x9x64xbf16> to vector<1x1x9x64xbf16>
    %33 = vector.shape_cast %32 : vector<1x1x9x64xbf16> to vector<1x9x64xbf16>
    %34 = vector.extract_strided_slice %31 {offsets = [0, 0, 0], sizes = [1, 8, 64], strides = [1, 1, 1]} : vector<1x9x64xbf16> to vector<1x8x64xbf16>
    %35 = vector.extract_strided_slice %33 {offsets = [0, 0, 0], sizes = [1, 8, 64], strides = [1, 1, 1]} : vector<1x9x64xbf16> to vector<1x8x64xbf16>
    %36 = vector.extract_strided_slice %31 {offsets = [0, 1, 0], sizes = [1, 8, 64], strides = [1, 1, 1]} : vector<1x9x64xbf16> to vector<1x8x64xbf16>
    %37 = tpu.concatenate %34, %35, %36 in 2 : vector<1x8x64xbf16>, vector<1x8x64xbf16>, vector<1x8x64xbf16> -> vector<1x8x192xbf16>
    %38 = vector.shape_cast %37 : vector<1x8x192xbf16> to vector<8x192xbf16>
    %c0_13 = arith.constant 0 : index
    %c0_14 = arith.constant 0 : index
    %39 = vector.load %arg3[%c0_13, %c0_14] : memref<192x128xbf16, #tpu.memory_space<vmem>>, vector<192x128xbf16>
    %cst_15 = arith.constant dense<0.000000e+00> : vector<8x128xf32>
    %40 = tpu.matmul %38, %39, %cst_15 {dimension_numbers = #tpu.dot_dimension_numbers<[1], [0], [0], [1], [0, 0, 1, 1], [], []>} : vector<8x192xbf16>, vector<192x128xbf16>, vector<8x128xf32> -> vector<8x128xf32>
    %41 = vector.shape_cast %40 : vector<8x128xf32> to vector<1x8x128xf32>
    %42 = vector.shape_cast %29 : vector<1x1xf32> to vector<1x1x1xf32>
    %43 = vector.shape_cast %2 : vector<1x128xf32> to vector<1x1x128xf32>
    %44 = vector.broadcast %42 : vector<1x1x1xf32> to vector<1x1x128xf32>
    %45 = arith.mulf %43, %44 : vector<1x1x128xf32>
    %46 = vector.broadcast %45 : vector<1x1x128xf32> to vector<1x8x128xf32>
    %47 = arith.mulf %41, %46 : vector<1x8x128xf32>
    %48 = vector.shape_cast %3 : vector<1x128xf32> to vector<1x1x128xf32>
    %49 = vector.broadcast %48 : vector<1x1x128xf32> to vector<1x8x128xf32>
    %50 = arith.addf %47, %49 : vector<1x8x128xf32>
    %cst_16 = arith.constant 0.000000e+00 : f32
    %51 = vector.broadcast %cst_16 : f32 to vector<1x8x128xf32>
    %52 = arith.maximumf %50, %51 : vector<1x8x128xf32>
    %53 = arith.truncf %52 : vector<1x8x128xf32> to vector<1x8x128xbf16>
    %cst_17 = arith.constant 0.000000e+00 : bf16
    %54 = vector.broadcast %cst_17 : bf16 to vector<1x1x128xbf16>
    %55 = vector.extract_strided_slice %53 {offsets = [0, 1, 0], sizes = [1, 7, 128], strides = [1, 1, 1]} : vector<1x8x128xbf16> to vector<1x7x128xbf16>
    %56 = tpu.concatenate %55, %54 in 1 : vector<1x7x128xbf16>, vector<1x1x128xbf16> -> vector<1x8x128xbf16>
    %57 = vector.shape_cast %53 : vector<1x8x128xbf16> to vector<8x128xbf16>
    %c0_18 = arith.constant 0 : index
    %c0_19 = arith.constant 0 : index
    %58 = vector.load %arg4[%c0_18, %c0_19] : memref<128x128xbf16, #tpu.memory_space<vmem>>, vector<128x128xbf16>
    %cst_20 = arith.constant dense<0.000000e+00> : vector<8x128xf32>
    %59 = tpu.matmul %57, %58, %cst_20 {dimension_numbers = #tpu.dot_dimension_numbers<[1], [0], [0], [1], [0, 0, 1, 1], [], []>} : vector<8x128xbf16>, vector<128x128xbf16>, vector<8x128xf32> -> vector<8x128xf32>
    %60 = tpu.concatenate %56, %53 in 2 : vector<1x8x128xbf16>, vector<1x8x128xbf16> -> vector<1x8x256xbf16>
    %61 = vector.shape_cast %60 : vector<1x8x256xbf16> to vector<8x256xbf16>
    %c0_21 = arith.constant 0 : index
    %c0_22 = arith.constant 0 : index
    %62 = vector.load %arg5[%c0_21, %c0_22] : memref<256x128xbf16, #tpu.memory_space<vmem>>, vector<256x128xbf16>
    %cst_23 = arith.constant dense<0.000000e+00> : vector<8x128xf32>
    %63 = tpu.matmul %61, %62, %cst_23 {dimension_numbers = #tpu.dot_dimension_numbers<[1], [0], [0], [1], [0, 0, 1, 1], [], []>} : vector<8x256xbf16>, vector<256x128xbf16>, vector<8x128xf32> -> vector<8x128xf32>
    %64 = vector.shape_cast %59 : vector<8x128xf32> to vector<1x8x128xf32>
    %65 = vector.shape_cast %4 : vector<1x128xf32> to vector<1x1x128xf32>
    %66 = vector.broadcast %65 : vector<1x1x128xf32> to vector<1x8x128xf32>
    %67 = arith.mulf %64, %66 : vector<1x8x128xf32>
    %68 = vector.shape_cast %5 : vector<1x128xf32> to vector<1x1x128xf32>
    %69 = vector.broadcast %68 : vector<1x1x128xf32> to vector<1x8x128xf32>
    %70 = arith.addf %67, %69 : vector<1x8x128xf32>
    %cst_24 = arith.constant 0.000000e+00 : f32
    %71 = vector.broadcast %cst_24 : f32 to vector<1x8x128xf32>
    %72 = arith.maximumf %70, %71 : vector<1x8x128xf32>
    %73 = arith.truncf %72 : vector<1x8x128xf32> to vector<1x8x128xbf16>
    %74 = vector.shape_cast %63 : vector<8x128xf32> to vector<1x8x128xf32>
    %75 = vector.shape_cast %4 : vector<1x128xf32> to vector<1x1x128xf32>
    %76 = vector.broadcast %75 : vector<1x1x128xf32> to vector<1x8x128xf32>
    %77 = arith.mulf %74, %76 : vector<1x8x128xf32>
    %78 = vector.shape_cast %5 : vector<1x128xf32> to vector<1x1x128xf32>
    %79 = vector.broadcast %78 : vector<1x1x128xf32> to vector<1x8x128xf32>
    %80 = arith.addf %77, %79 : vector<1x8x128xf32>
    %cst_25 = arith.constant 0.000000e+00 : f32
    %81 = vector.broadcast %cst_25 : f32 to vector<1x8x128xf32>
    %82 = arith.maximumf %80, %81 : vector<1x8x128xf32>
    %83 = arith.truncf %82 : vector<1x8x128xf32> to vector<1x8x128xbf16>
    %cst_26 = arith.constant 0.000000e+00 : bf16
    %84 = vector.broadcast %cst_26 : bf16 to vector<1x1x128xbf16>
    %85 = vector.extract_strided_slice %83 {offsets = [0, 0, 0], sizes = [1, 7, 128], strides = [1, 1, 1]} : vector<1x8x128xbf16> to vector<1x7x128xbf16>
    %86 = tpu.concatenate %84, %85 in 1 : vector<1x1x128xbf16>, vector<1x7x128xbf16> -> vector<1x8x128xbf16>
    %87 = vector.extract_strided_slice %73 {offsets = [0, 1, 0], sizes = [1, 7, 128], strides = [1, 1, 1]} : vector<1x8x128xbf16> to vector<1x7x128xbf16>
    %88 = tpu.concatenate %87, %84 in 1 : vector<1x7x128xbf16>, vector<1x1x128xbf16> -> vector<1x8x128xbf16>
    %89 = tpu.concatenate %86, %73, %83 in 2 : vector<1x8x128xbf16>, vector<1x8x128xbf16>, vector<1x8x128xbf16> -> vector<1x8x384xbf16>
    %90 = tpu.concatenate %73, %83, %88 in 2 : vector<1x8x128xbf16>, vector<1x8x128xbf16>, vector<1x8x128xbf16> -> vector<1x8x384xbf16>
    %91 = tpu.concatenate %89, %90 in 1 : vector<1x8x384xbf16>, vector<1x8x384xbf16> -> vector<1x16x384xbf16>
    %92 = vector.shape_cast %91 : vector<1x16x384xbf16> to vector<16x384xbf16>
    %c0_27 = arith.constant 0 : index
    %c0_28 = arith.constant 0 : index
    %93 = vector.load %arg6[%c0_27, %c0_28] : memref<384x128xbf16, #tpu.memory_space<vmem>>, vector<384x128xbf16>
    %cst_29 = arith.constant dense<0.000000e+00> : vector<16x128xf32>
    %94 = tpu.matmul %92, %93, %cst_29 {dimension_numbers = #tpu.dot_dimension_numbers<[1], [0], [0], [1], [0, 0, 1, 1], [], []>} : vector<16x384xbf16>, vector<384x128xbf16>, vector<16x128xf32> -> vector<16x128xf32>
    %95 = vector.shape_cast %94 : vector<16x128xf32> to vector<1x16x128xf32>
    %96 = vector.shape_cast %6 : vector<1x128xf32> to vector<1x1x128xf32>
    %97 = vector.broadcast %96 : vector<1x1x128xf32> to vector<1x16x128xf32>
    %98 = arith.mulf %95, %97 : vector<1x16x128xf32>
    %99 = vector.shape_cast %7 : vector<1x128xf32> to vector<1x1x128xf32>
    %100 = vector.broadcast %99 : vector<1x1x128xf32> to vector<1x16x128xf32>
    %101 = arith.addf %98, %100 : vector<1x16x128xf32>
    %cst_30 = arith.constant 0.000000e+00 : f32
    %102 = vector.broadcast %cst_30 : f32 to vector<1x16x128xf32>
    %103 = arith.maximumf %101, %102 : vector<1x16x128xf32>
    %c0_31 = arith.constant 0 : index
    %c0_32 = arith.constant 0 : index
    %c0_33 = arith.constant 0 : index
    %104 = vector.load %arg8[%c0_31, %c0_32, %c0_33] : memref<1x16x128xf32, #tpu.memory_space<vmem>>, vector<1x16x128xf32>
    tpu.vector_store %arg8[%c0_31, %c0_32, %c0_33], %103 {strides = array<i32>} : memref<1x16x128xf32, #tpu.memory_space<vmem>>, vector<1x16x128xf32>,
    return
  }
  func.func @transform_0(%arg0: i32) -> (i32, i32, i32, i32) {
    %c0_i32 = arith.constant 0 : i32
    %c0_i32_0 = arith.constant 0 : i32
    %c0_i32_1 = arith.constant 0 : i32
    %c0_i32_2 = arith.constant 0 : i32
    return %arg0, %c0_i32, %c0_i32_0, %c0_i32_1 : i32, i32, i32, i32
  }
  func.func @transform_1(%arg0: i32) -> (i32, i32) {
    %c0_i32 = arith.constant 0 : i32
    %c0_i32_0 = arith.constant 0 : i32
    %c0_i32_1 = arith.constant 0 : i32
    return %c0_i32, %c0_i32_0 : i32, i32
  }
  func.func @transform_2(%arg0: i32) -> (i32, i32) {
    %c0_i32 = arith.constant 0 : i32
    %c0_i32_0 = arith.constant 0 : i32
    %c0_i32_1 = arith.constant 0 : i32
    return %c0_i32, %c0_i32_0 : i32, i32
  }
  func.func @transform_3(%arg0: i32) -> (i32, i32) {
    %c0_i32 = arith.constant 0 : i32
    %c0_i32_0 = arith.constant 0 : i32
    %c0_i32_1 = arith.constant 0 : i32
    return %c0_i32, %c0_i32_0 : i32, i32
  }
  func.func @transform_4(%arg0: i32) -> (i32, i32) {
    %c0_i32 = arith.constant 0 : i32
    %c0_i32_0 = arith.constant 0 : i32
    %c0_i32_1 = arith.constant 0 : i32
    return %c0_i32, %c0_i32_0 : i32, i32
  }
  func.func @transform_5(%arg0: i32) -> (i32, i32) {
    %c0_i32 = arith.constant 0 : i32
    %c0_i32_0 = arith.constant 0 : i32
    %c0_i32_1 = arith.constant 0 : i32
    return %c0_i32, %c0_i32_0 : i32, i32
  }
  func.func @transform_6(%arg0: i32) -> (i32, i32) {
    %c0_i32 = arith.constant 0 : i32
    %c0_i32_0 = arith.constant 0 : i32
    %c0_i32_1 = arith.constant 0 : i32
    return %c0_i32, %c0_i32_0 : i32, i32
  }
  func.func @transform_7(%arg0: i32) -> (i32, i32, i32) {
    %c0_i32 = arith.constant 0 : i32
    %c0_i32_0 = arith.constant 0 : i32
    %c0_i32_1 = arith.constant 0 : i32
    return %arg0, %c0_i32, %c0_i32_0 : i32, i32, i32
  }
}

</mosaic_0001>

<llo_original>
// kernel: conv_alpha_block.1
$region0: #{conv_alpha_block.1}
  #allocation0 [shape = 'u32[]', space=smem, size = 0x4, offset = 0x4, fixed_abs, tag = 'smem constant byte address 0x4 - core index']
  #allocation1 [shape = 'u32[144,128]{1,0:T(1,128)}', space=vmem, size = 0x12000, scoped, tag = 'internal scratch']
  %s0 = inlined_call_operand.vmem [shape: bf16[2,2,9,64], index: 0, kind: input, shape index: {}]
  %s1 = inlined_call_operand.vmem [shape: f32[64,2], index: 1, kind: input, shape index: {}]
  %s2 = inlined_call_operand.vmem [shape: bf16[192,128], index: 2, kind: input, shape index: {}]
  %s3 = inlined_call_operand.vmem [shape: bf16[128,128], index: 3, kind: input, shape index: {}]
  %s4 = inlined_call_operand.vmem [shape: bf16[256,128], index: 4, kind: input, shape index: {}]
  %s5 = inlined_call_operand.vmem [shape: bf16[384,128], index: 5, kind: input, shape index: {}]
  %s6 = inlined_call_operand.vmem [shape: f32[8,128], index: 6, kind: input, shape index: {}]
  %s7 = inlined_call_operand.vmem [shape: f32[2,16,128], index: 7, kind: output, shape index: {}]
  %s8 = sld [smem:[#allocation0]]
  $region61: #{conv_alpha_block.1} parent=0
    _
  %s10 = ssub.s32 1, %s8
  %s11 = scalar_select 0, %s10, %s8
  loop: start=0, step=1, limit=4
  $region2: #{conv_alpha_block.1} parent=0 // loop_pre_header
    _
  $region3: #{conv_alpha_block.1} parent=0 // loop_header
    %s13 = sphi 0, %s17
    %p14 = scmp.ge.s32.totalorder %s13, 4
    %s23 = sphi 0, %s25
    %s26 = sphi 0, %s23
    %s27 = sphi 0, %s26
    %s43 = sphi 0, %s27
    %s47 = sphi 0, %s47
    %s49 = sphi 0, %s47
    %s50 = sphi 0, %s49
    %s64 = sphi 0, %s50
    %s68 = sphi 0, %s68
    %s70 = sphi 0, %s68
    %s71 = sphi 0, %s70
    %s85 = sphi 0, %s71
    %s89 = sphi 0, %s89
    %s91 = sphi 0, %s89
    %s92 = sphi 0, %s91
    %s106 = sphi 0, %s92
    %s110 = sphi 0, %s110
    %s112 = sphi 0, %s110
    %s113 = sphi 0, %s112
    %s127 = sphi 0, %s113
    %s131 = sphi 0, %s131
    %s133 = sphi 0, %s131
    %s134 = sphi 0, %s133
    %s148 = sphi 0, %s134
    %s152 = sphi 0, %s152
    %s154 = sphi 0, %s152
    %s155 = sphi 0, %s154
    %s169 = sphi 0, %s155
    %s175 = sphi 0, %s177
    %s178 = sphi 0, %s175
    %s179 = sphi 0, %s178
    %s195 = sphi 0, %s179
  $region4: #{conv_alpha_block.1} parent=0 // loop_header_branch
    %16 = sbr.rel (%p14) target = $region8
  $region5: #{conv_alpha_block.1} parent=0 // loop_body
    %s18 = ssub.s32 %s13, 1
    %s19 = ssub.s32 %s13, 2
    %s20 = sadd.s32 %s13, 1
    %s21 = ssub.s32 %s13, %s20
    %p22 = scmp.eq.s32.totalorder %s21, 0
    %s24 = sadd.s32 %s23, 1
    %s25 = scalar_select %p22, %s23, %s24
    %p28 = pneg %p22
    %p29 = scmp.eq.s32.totalorder %s13, 1
    %p30 = por %p28, %p29
    %p31 = scmp.ne.s32.totalorder %s23, %s26
    %p32 = scmp.eq.s32.totalorder %s13, 0
    %p33 = por %p31, %p32
    %p34 = scmp.ne.s32.totalorder %s23, %s26
    %p35 = scmp.eq.s32.totalorder %s18, 1
    %p36 = por %p34, %p35
    %p37 = scmp.ne.s32.totalorder %s26, %s27
    %p38 = scmp.eq.s32.totalorder %s18, 0
    %p39 = por %p37, %p38
    %p40 = scmp.ne.s32.totalorder %s26, %s27
    %p41 = scmp.eq.s32.totalorder %s19, 1
    %p42 = por %p40, %p41
    %p44 = scmp.ne.s32.totalorder %s27, %s43
    %p45 = scmp.eq.s32.totalorder %s19, 0
    %p46 = por %p44, %p45
    %s48 = sadd.s32 %s47, 1
    %p51 = scmp.eq.s32.totalorder %s13, 1
    %p52 = scmp.ne.s32.totalorder %s47, %s49
    %p53 = scmp.eq.s32.totalorder %s13, 0
    %p54 = por %p52, %p53
    %p55 = scmp.ne.s32.totalorder %s47, %s49
    %p56 = scmp.eq.s32.totalorder %s18, 1
    %p57 = por %p55, %p56
    %p58 = scmp.ne.s32.totalorder %s49, %s50
    %p59 = scmp.eq.s32.totalorder %s18, 0
    %p60 = por %p58, %p59
    %p61 = scmp.ne.s32.totalorder %s49, %s50
    %p62 = scmp.eq.s32.totalorder %s19, 1
    %p63 = por %p61, %p62
    %p65 = scmp.ne.s32.totalorder %s50, %s64
    %p66 = scmp.eq.s32.totalorder %s19, 0
    %p67 = por %p65, %p66
    %s69 = sadd.s32 %s68, 1
    %p72 = scmp.eq.s32.totalorder %s13, 1
    %p73 = scmp.ne.s32.totalorder %s68, %s70
    %p74 = scmp.eq.s32.totalorder %s13, 0
    %p75 = por %p73, %p74
    %p76 = scmp.ne.s32.totalorder %s68, %s70
    %p77 = scmp.eq.s32.totalorder %s18, 1
    %p78 = por %p76, %p77
    %p79 = scmp.ne.s32.totalorder %s70, %s71
    %p80 = scmp.eq.s32.totalorder %s18, 0
    %p81 = por %p79, %p80
    %p82 = scmp.ne.s32.totalorder %s70, %s71
    %p83 = scmp.eq.s32.totalorder %s19, 1
    %p84 = por %p82, %p83
    %p86 = scmp.ne.s32.totalorder %s71, %s85
    %p87 = scmp.eq.s32.totalorder %s19, 0
    %p88 = por %p86, %p87
    %s90 = sadd.s32 %s89, 1
    %p93 = scmp.eq.s32.totalorder %s13, 1
    %p94 = scmp.ne.s32.totalorder %s89, %s91
    %p95 = scmp.eq.s32.totalorder %s13, 0
    %p96 = por %p94, %p95
    %p97 = scmp.ne.s32.totalorder %s89, %s91
    %p98 = scmp.eq.s32.totalorder %s18, 1
    %p99 = por %p97, %p98
    %p100 = scmp.ne.s32.totalorder %s91, %s92
    %p101 = scmp.eq.s32.totalorder %s18, 0
    %p102 = por %p100, %p101
    %p103 = scmp.ne.s32.totalorder %s91, %s92
    %p104 = scmp.eq.s32.totalorder %s19, 1
    %p105 = por %p103, %p104
    %p107 = scmp.ne.s32.totalorder %s92, %s106
    %p108 = scmp.eq.s32.totalorder %s19, 0
    %p109 = por %p107, %p108
    %s111 = sadd.s32 %s110, 1
    %p114 = scmp.eq.s32.totalorder %s13, 1
    %p115 = scmp.ne.s32.totalorder %s110, %s112
    %p116 = scmp.eq.s32.totalorder %s13, 0
    %p117 = por %p115, %p116
    %p118 = scmp.ne.s32.totalorder %s110, %s112
    %p119 = scmp.eq.s32.totalorder %s18, 1
    %p120 = por %p118, %p119
    %p121 = scmp.ne.s32.totalorder %s112, %s113
    %p122 = scmp.eq.s32.totalorder %s18, 0
    %p123 = por %p121, %p122
    %p124 = scmp.ne.s32.totalorder %s112, %s113
    %p125 = scmp.eq.s32.totalorder %s19, 1
    %p126 = por %p124, %p125
    %p128 = scmp.ne.s32.totalorder %s113, %s127
    %p129 = scmp.eq.s32.totalorder %s19, 0
    %p130 = por %p128, %p129
    %s132 = sadd.s32 %s131, 1
    %p135 = scmp.eq.s32.totalorder %s13, 1
    %p136 = scmp.ne.s32.totalorder %s131, %s133
    %p137 = scmp.eq.s32.totalorder %s13, 0
    %p138 = por %p136, %p137
    %p139 = scmp.ne.s32.totalorder %s131, %s133
    %p140 = scmp.eq.s32.totalorder %s18, 1
    %p141 = por %p139, %p140
    %p142 = scmp.ne.s32.totalorder %s133, %s134
    %p143 = scmp.eq.s32.totalorder %s18, 0
    %p144 = por %p142, %p143
    %p145 = scmp.ne.s32.totalorder %s133, %s134
    %p146 = scmp.eq.s32.totalorder %s19, 1
    %p147 = por %p145, %p146
    %p149 = scmp.ne.s32.totalorder %s134, %s148
    %p150 = scmp.eq.s32.totalorder %s19, 0
    %p151 = por %p149, %p150
    %s153 = sadd.s32 %s152, 1
    %p156 = scmp.eq.s32.totalorder %s13, 1
    %p157 = scmp.ne.s32.totalorder %s152, %s154
    %p158 = scmp.eq.s32.totalorder %s13, 0
    %p159 = por %p157, %p158
    %p160 = scmp.ne.s32.totalorder %s152, %s154
    %p161 = scmp.eq.s32.totalorder %s18, 1
    %p162 = por %p160, %p161
    %p163 = scmp.ne.s32.totalorder %s154, %s155
    %p164 = scmp.eq.s32.totalorder %s18, 0
    %p165 = por %p163, %p164
    %p166 = scmp.ne.s32.totalorder %s154, %s155
    %p167 = scmp.eq.s32.totalorder %s19, 1
    %p168 = por %p166, %p167
    %p170 = scmp.ne.s32.totalorder %s155, %s169
    %p171 = scmp.eq.s32.totalorder %s19, 0
    %p172 = por %p170, %p171
    %s173 = ssub.s32 %s13, %s20
    %p174 = scmp.eq.s32.totalorder %s173, 0
    %s176 = sadd.s32 %s175, 1
    %s177 = scalar_select %p174, %s175, %s176
    %p180 = pneg %p174
    %p181 = scmp.eq.s32.totalorder %s13, 1
    %p182 = por %p180, %p181
    %p183 = scmp.ne.s32.totalorder %s175, %s178
    %p184 = scmp.eq.s32.totalorder %s13, 0
    %p185 = por %p183, %p184
    %p186 = scmp.ne.s32.totalorder %s175, %s178
    %p187 = scmp.eq.s32.totalorder %s18, 1
    %p188 = por %p186, %p187
    %p189 = scmp.ne.s32.totalorder %s178, %s179
    %p190 = scmp.eq.s32.totalorder %s18, 0
    %p191 = por %p189, %p190
    %p192 = scmp.ne.s32.totalorder %s178, %s179
    %p193 = scmp.eq.s32.totalorder %s19, 1
    %p194 = por %p192, %p193
    %p196 = scmp.ne.s32.totalorder %s179, %s195
    %p197 = scmp.eq.s32.totalorder %s19, 0
    %p198 = por %p196, %p197
    %p199 = scmp.le.s32.totalorder 1, %s13
    %p200 = scmp.lt.s32.totalorder %s13, 3
    %p201 = pnand %p199, %p200
    %p202 = pneg %p201
    // Predicated region
    $region9: #{conv_alpha_block.1} parent=5 // pred_check
      _
    $region10: #{conv_alpha_block.1} parent=5 // pred_check_branch
      %204 = sbr.rel (%p201) target = $region12
    $region11: #{conv_alpha_block.1} parent=5 // pred_region
      %s205 = ssub.s32 %s13, 1
      // Predicated region
      $region13: #{conv_alpha_block.1} parent=11 // pred_check
        %p206 = pneg %p60
      $region14: #{conv_alpha_block.1} parent=11 // pred_check_branch
        %208 = sbr.rel (%p206) target = $region16
      $region15: #{conv_alpha_block.1} parent=11 // pred_region
        _
      $region16: #{conv_alpha_block.1} parent=11 // pred_fallthru
        _
      // Predicated region
      $region17: #{conv_alpha_block.1} parent=11 // pred_check
        %p209 = pneg %p81
      $region18: #{conv_alpha_block.1} parent=11 // pred_check_branch
        %211 = sbr.rel (%p209) target = $region20
      $region19: #{conv_alpha_block.1} parent=11 // pred_region
        _
      $region20: #{conv_alpha_block.1} parent=11 // pred_fallthru
        _
      // Predicated region
      $region21: #{conv_alpha_block.1} parent=11 // pred_check
        %p212 = pneg %p102
      $region22: #{conv_alpha_block.1} parent=11 // pred_check_branch
        %214 = sbr.rel (%p212) target = $region24
      $region23: #{conv_alpha_block.1} parent=11 // pred_region
        _
      $region24: #{conv_alpha_block.1} parent=11 // pred_fallthru
        _
      // Predicated region
      $region25: #{conv_alpha_block.1} parent=11 // pred_check
        %p215 = pneg %p123
      $region26: #{conv_alpha_block.1} parent=11 // pred_check_branch
        %217 = sbr.rel (%p215) target = $region28
      $region27: #{conv_alpha_block.1} parent=11 // pred_region
        _
      $region28: #{conv_alpha_block.1} parent=11 // pred_fallthru
        _
      // Predicated region
      $region29: #{conv_alpha_block.1} parent=11 // pred_check
        %p218 = pneg %p144
      $region30: #{conv_alpha_block.1} parent=11 // pred_check_branch
        %220 = sbr.rel (%p218) target = $region32
      $region31: #{conv_alpha_block.1} parent=11 // pred_region
        _
      $region32: #{conv_alpha_block.1} parent=11 // pred_fallthru
        _
      // Predicated region
      $region33: #{conv_alpha_block.1} parent=11 // pred_check
        %p221 = pneg %p165
      $region34: #{conv_alpha_block.1} parent=11 // pred_check_branch
        %223 = sbr.rel (%p221) target = $region36
      $region35: #{conv_alpha_block.1} parent=11 // pred_region
        _
      $region36: #{conv_alpha_block.1} parent=11 // pred_fallthru
        _
    $region12: #{conv_alpha_block.1} parent=5 // pred_fallthru
      _
    %p224 = scmp.lt.s32.totalorder %s13, 2
    // Predicated region
    $region37: #{conv_alpha_block.1} parent=5 // pred_check
      %p225 = pneg %p224
    $region38: #{conv_alpha_block.1} parent=5 // pred_check_branch
      %227 = sbr.rel (%p225) target = $region40
    $region39: #{conv_alpha_block.1} parent=5 // pred_region
      // Predicated region
      $region41: #{conv_alpha_block.1} parent=39 // pred_check
        %p228 = pneg %p33
      $region42: #{conv_alpha_block.1} parent=39 // pred_check_branch
        %230 = sbr.rel (%p228) target = $region44
      $region43: #{conv_alpha_block.1} parent=39 // pred_region
        %p231 = scmp.lt.s32.totalorder %s13, 1
        %s232 = scalar_select %p231, %s13, 1
        %s233 = smul.addr %s232, 4
        %s234 = smul.addr %s233, 4
        %s235 = scalar_lea.vmem %s0, %s234
      $region44: #{conv_alpha_block.1} parent=39 // pred_fallthru
        _
    $region40: #{conv_alpha_block.1} parent=5 // pred_fallthru
      _
    %p236 = scmp.le.s32.totalorder 1, %s13
    %p237 = scmp.lt.s32.totalorder %s13, 3
    %p238 = pnand %p236, %p237
    %p239 = pneg %p238
    // Predicated region
    $region45: #{conv_alpha_block.1} parent=5 // pred_check
      _
    $region46: #{conv_alpha_block.1} parent=5 // pred_check_branch
      %241 = sbr.rel (%p238) target = $region48
    $region47: #{conv_alpha_block.1} parent=5 // pred_region
      %s242 = ssub.s32 %s13, 1
      %p243 = scmp.lt.s32.totalorder %s18, 1
      %s244 = scalar_select %p243, %s18, 1
      %s245 = smul.addr %s244, 4
      %s246 = smul.addr %s245, 4
      %s247 = scalar_lea.vmem %s0, %s246
      %p248 = pneg %p39
      %p249 = pneg %p36
      %p250 = pneg %p60
      %p251 = pneg %p57
      %p252 = pneg %p81
      %p253 = pneg %p78
      %p254 = pneg %p102
      %p255 = pneg %p99
      %p256 = pneg %p123
      %p257 = pneg %p120
      %p258 = pneg %p144
      %p259 = pneg %p141
      %p260 = pneg %p165
      %p261 = pneg %p162
      %p262 = pneg %p191
      %p263 = pneg %p188
      %p264 = scmp.lt.s32.totalorder %s18, 1
      %s265 = scalar_select %p264, %s18, 1
      %s266 = smul.addr %s265, 2
      %s267 = smul.addr %s266, 8
      %s268 = scalar_lea.vmem %s7, %s267
      %p269 = scmp.lt.s32.totalorder %s18, 1
      %s270 = scalar_select %p269, %s18, 1
      %s271 = smul.addr %s270, 4
      %s272 = smul.addr %s271, 4
      %s273 = scalar_lea.vmem %s0, %s272
      %p274 = scmp.lt.s32.totalorder %s18, 1
      %s275 = scalar_select %p274, %s18, 1
      %s276 = smul.addr %s275, 2
      %s277 = smul.addr %s276, 8
      %s278 = scalar_lea.vmem %s7, %s277
      %v280 = vld [vmem:[%s273] sm:$0xf]
      %v281 = vld [vmem:[%s273 + $0x4] sm:$0x1]
      %v282 = vld [vmem:[%s273 + $0x8] sm:$0xf]
      %v283 = vld [vmem:[%s273 + $0xc] sm:$0x1]
      %v284 = vld [vmem:[%s6] sm:$0xff]
      %v285 = vunpack.c.l.bf16 %v280
      %v286 = vunpack.c.l.bf16 %v281
      %v287 = vunpack.c.l.bf16 %v282
      %v288 = vunpack.c.l.bf16 %v283
      %v293 = vcombine.high %v285, %v285
      %v295 = vunpack.c.l.s4 1966171168
      %v296 = vunpack.c.0.s8 %v295
      %v297 = vlaneseq
      %v298 = vshrl.u32 %v297, 7
      %v299 = vsub.s32 %v296, %v298
      %v300 = vrot.slane %v285, %v299
      %v302 = vunpack.c.l.s4 1966171168
      %v303 = vunpack.c.0.s8 %v302
      %v304 = vlaneseq
      %v305 = vshrl.u32 %v304, 7
      %v306 = vsub.s32 %v303, %v305
      %v307 = vrot.slane %v293, %v306
      %v308 = vcombine.high %v300, %v300
      %v309 = vcombine.high %v307, %v307
      %v311 = vunpack.c.l.s4 1966171168
      %v312 = vunpack.c.0.s8 %v311
      %v313 = vlaneseq
      %v314 = vshrl.u32 %v313, 7
      %v315 = vsub.s32 %v312, %v314
      %v316 = vrot.slane %v300, %v315
      %v318 = vunpack.c.l.s4 1966171168
      %v319 = vunpack.c.0.s8 %v318
      %v320 = vlaneseq
      %v321 = vshrl.u32 %v320, 7
      %v322 = vsub.s32 %v319, %v321
      %v323 = vrot.slane %v307, %v322
      %v325 = vunpack.c.l.s4 1966171168
      %v326 = vunpack.c.0.s8 %v325
      %v327 = vlaneseq
      %v328 = vshrl.u32 %v327, 7
      %v329 = vsub.s32 %v326, %v328
      %v330 = vrot.slane %v308, %v329
      %v332 = vunpack.c.l.s4 1966171168
      %v333 = vunpack.c.0.s8 %v332
      %v334 = vlaneseq
      %v335 = vshrl.u32 %v334, 7
      %v336 = vsub.s32 %v333, %v335
      %v337 = vrot.slane %v309, %v336
      %v338 = vcombine.high %v316, %v316
      %v339 = vcombine.high %v323, %v323
      %v340 = vcombine.high %v330, %v330
      %v341 = vcombine.high %v337, %v337
      %v343 = vunpack.c.l.s4 1966171168
      %v344 = vunpack.c.0.s8 %v343
      %v345 = vlaneseq
      %v346 = vshrl.u32 %v345, 7
      %v347 = vsub.s32 %v344, %v346
      %v348 = vrot.slane %v286, %v347
      %v350 = vunpack.c.l.s4 1966171168
      %v351 = vunpack.c.0.s8 %v350
      %v352 = vlaneseq
      %v353 = vshrl.u32 %v352, 7
      %v354 = vsub.s32 %v351, %v353
      %v355 = vrot.slane %v348, %v354
      %v356 = vcombine.high %v287, %v287
      %v358 = vunpack.c.l.s4 1966171168
      %v359 = vunpack.c.0.s8 %v358
      %v360 = vlaneseq
      %v361 = vshrl.u32 %v360, 7
      %v362 = vsub.s32 %v359, %v361
      %v363 = vrot.slane %v287, %v362
      %v365 = vunpack.c.l.s4 1966171168
      %v366 = vunpack.c.0.s8 %v365
      %v367 = vlaneseq
      %v368 = vshrl.u32 %v367, 7
      %v369 = vsub.s32 %v366, %v368
      %v370 = vrot.slane %v356, %v369
      %v371 = vcombine.high %v363, %v363
      %v372 = vcombine.high %v370, %v370
      %v374 = vunpack.c.l.s4 1966171168
      %v375 = vunpack.c.0.s8 %v374
      %v376 = vlaneseq
      %v377 = vshrl.u32 %v376, 7
      %v378 = vsub.s32 %v375, %v377
      %v379 = vrot.slane %v363, %v378
      %v381 = vunpack.c.l.s4 1966171168
      %v382 = vunpack.c.0.s8 %v381
      %v383 = vlaneseq
      %v384 = vshrl.u32 %v383, 7
      %v385 = vsub.s32 %v382, %v384
      %v386 = vrot.slane %v370, %v385
      %v388 = vunpack.c.l.s4 1966171168
      %v389 = vunpack.c.0.s8 %v388
      %v390 = vlaneseq
      %v391 = vshrl.u32 %v390, 7
      %v392 = vsub.s32 %v389, %v391
      %v393 = vrot.slane %v371, %v392
      %v395 = vunpack.c.l.s4 1966171168
      %v396 = vunpack.c.0.s8 %v395
      %v397 = vlaneseq
      %v398 = vshrl.u32 %v397, 7
      %v399 = vsub.s32 %v396, %v398
      %v400 = vrot.slane %v372, %v399
      %v401 = vcombine.high %v379, %v379
      %v402 = vcombine.high %v386, %v386
      %v403 = vcombine.high %v393, %v393
      %v404 = vcombine.high %v400, %v400
      %v406 = vunpack.c.l.s4 1966171168
      %v407 = vunpack.c.0.s8 %v406
      %v408 = vlaneseq
      %v409 = vshrl.u32 %v408, 7
      %v410 = vsub.s32 %v407, %v409
      %v411 = vrot.slane %v288, %v410
      %v413 = vunpack.c.l.s4 1966171168
      %v414 = vunpack.c.0.s8 %v413
      %v415 = vlaneseq
      %v416 = vshrl.u32 %v415, 7
      %v417 = vsub.s32 %v414, %v416
      %v418 = vrot.slane %v411, %v417
      %v419 = vcombine.low %v316, %v330
      %v420 = vcombine.low %v338, %v340
      %v421 = vcombine.low %v323, %v337
      %v422 = vcombine.low %v339, %v341
      %v424 = vunpack.c.l.s4 1966171168
      %v425 = vunpack.c.0.s8 %v424
      %v426 = vlaneseq
      %v427 = vshrl.u32 %v426, 7
      %v428 = vsub.s32 %v425, %v427
      %v429 = vrot.slane %v419, %v428
      %v431 = vunpack.c.l.s4 1966171168
      %v432 = vunpack.c.0.s8 %v431
      %v433 = vlaneseq
      %v434 = vshrl.u32 %v433, 7
      %v435 = vsub.s32 %v432, %v434
      %v436 = vrot.slane %v420, %v435
      %v438 = vunpack.c.l.s4 1966171168
      %v439 = vunpack.c.0.s8 %v438
      %v440 = vlaneseq
      %v441 = vshrl.u32 %v440, 7
      %v442 = vsub.s32 %v439, %v441
      %v443 = vrot.slane %v421, %v442
      %v445 = vunpack.c.l.s4 1966171168
      %v446 = vunpack.c.0.s8 %v445
      %v447 = vlaneseq
      %v448 = vshrl.u32 %v447, 7
      %v449 = vsub.s32 %v446, %v448
      %v450 = vrot.slane %v422, %v449
      %v451 = vcombine.low %v429, %v436
      %v452 = vcombine.low %v443, %v450
      %v454 = vunpack.c.l.s4 1966171168
      %v455 = vunpack.c.0.s8 %v454
      %v456 = vlaneseq
      %v457 = vshrl.u32 %v456, 7
      %v458 = vsub.s32 %v455, %v457
      %v459 = vrot.slane %v451, %v458
      %v461 = vunpack.c.l.s4 1966171168
      %v462 = vunpack.c.0.s8 %v461
      %v463 = vlaneseq
      %v464 = vshrl.u32 %v463, 7
      %v465 = vsub.s32 %v462, %v464
      %v466 = vrot.slane %v452, %v465
      %v467 = vcombine.low %v459, %v466
      %v468 = vcombine.low %v355, %v379
      %v469 = vcombine.low %v393, %v401
      %v470 = vcombine.low %v403, %v386
      %v471 = vcombine.low %v400, %v402
      %v473 = vunpack.c.l.s4 1966171168
      %v474 = vunpack.c.0.s8 %v473
      %v475 = vlaneseq
      %v476 = vshrl.u32 %v475, 7
      %v477 = vsub.s32 %v474, %v476
      %v478 = vrot.slane %v468, %v477
      %v480 = vunpack.c.l.s4 1966171168
      %v481 = vunpack.c.0.s8 %v480
      %v482 = vlaneseq
      %v483 = vshrl.u32 %v482, 7
      %v484 = vsub.s32 %v481, %v483
      %v485 = vrot.slane %v469, %v484
      %v487 = vunpack.c.l.s4 1966171168
      %v488 = vunpack.c.0.s8 %v487
      %v489 = vlaneseq
      %v490 = vshrl.u32 %v489, 7
      %v491 = vsub.s32 %v488, %v490
      %v492 = vrot.slane %v470, %v491
      %v494 = vunpack.c.l.s4 1966171168
      %v495 = vunpack.c.0.s8 %v494
      %v496 = vlaneseq
      %v497 = vshrl.u32 %v496, 7
      %v498 = vsub.s32 %v495, %v497
      %v499 = vrot.slane %v471, %v498
      %v500 = vcombine.low %v478, %v485
      %v501 = vcombine.low %v492, %v499
      %v503 = vunpack.c.l.s4 1966171168
      %v504 = vunpack.c.0.s8 %v503
      %v505 = vlaneseq
      %v506 = vshrl.u32 %v505, 7
      %v507 = vsub.s32 %v504, %v506
      %v508 = vrot.slane %v500, %v507
      %v510 = vunpack.c.l.s4 1966171168
      %v511 = vunpack.c.0.s8 %v510
      %v512 = vlaneseq
      %v513 = vshrl.u32 %v512, 7
      %v514 = vsub.s32 %v511, %v513
      %v515 = vrot.slane %v501, %v514
      %v516 = vcombine.low %v508, %v515
      %v517 = vcombine.low %v404, %v418
      %v519 = vunpack.c.l.s4 1966171168
      %v520 = vunpack.c.0.s8 %v519
      %v521 = vlaneseq
      %v522 = vshrl.u32 %v521, 7
      %v523 = vsub.s32 %v520, %v522
      %v524 = vrot.slane %v517, %v523
      %v526 = vunpack.c.l.s4 1966171168
      %v527 = vunpack.c.0.s8 %v526
      %v528 = vlaneseq
      %v529 = vshrl.u32 %v528, 7
      %v530 = vsub.s32 %v527, %v529
      %v531 = vrot.slane %v524, %v530
      %vm535 = vcmask 523264
      %v536 = vsel %vm535, %v467, 0.0
      %v537 = vsel %vm535, %v516, 0.0
      %v538 = vadd.f32 %v536, %v537
      %vm539 = vcmask 517120
      %v540 = vsel %vm539, %v531, 0.0
      %v541 = vadd.f32 %v538, %v540
      %v542 = vrot.slane %v541, 4
      %v543 = vadd.f32 %v541, %v542
      %v544 = vrot.slane %v543, 2
      %v545 = vadd.f32 %v543, %v544
      %v546 = vrot.slane %v545, 1
      %v547 = vadd.f32 %v545, %v546
      %v548 = vld [vmem:[%s1] sm:$0xff]
      %v549 = vld [vmem:[%s1 + $0x8] sm:$0xff]
      %v550 = vld [vmem:[%s1 + $0x10] sm:$0xff]
      %v551 = vld [vmem:[%s1 + $0x18] sm:$0xff]
      %v552 = vld [vmem:[%s1 + $0x20] sm:$0xff]
      %v553 = vld [vmem:[%s1 + $0x28] sm:$0xff]
      %v554 = vld [vmem:[%s1 + $0x30] sm:$0xff]
      %v555 = vld [vmem:[%s1 + $0x38] sm:$0xff]
      %v557 = vrot.slane %v284, 6
      %v560 = vsel %vm535, %v547, 0
      %562 = vmatprep.subr.mxu0 0.0
      %563 = vmatpush1.msra.mxu0 0.0
      %564 = vmatprep.subr.mxu0 0.0
      %565 = vmatpush1.msra.mxu0 0.0
      %566 = vmatprep.subr.mxu0 0.0
      %567 = vmatpush1.msra.mxu0 0.0
      %568 = vmatprep.subr.mxu0 0.0
      %569 = vmatpush1.msra.mxu0 0.0
      %570 = vmatprep.subr.mxu0 0.0
      %571 = vmatpush1.msra.mxu0 0.0
      %572 = vmatprep.subr.mxu0 0.0
      %573 = vmatpush1.msra.mxu0 0.0
      %574 = vmatprep.subr.mxu0 0.0
      %575 = vmatpush1.msra.mxu0 0.0
      %576 = vmatprep.subr.mxu0 0.0
      %577 = vmatpush1.msra.mxu0 0.0
      %578 = vmatprep.subr.mxu0 0.0
      %579 = vmatpush1.msra.mxu0 %v555
      %580 = vmatprep.subr.mxu0 0.0
      %581 = vmatpush1.msra.mxu0 %v554
      %582 = vmatprep.subr.mxu0 0.0
      %583 = vmatpush1.msra.mxu0 %v553
      %584 = vmatprep.subr.mxu0 0.0
      %585 = vmatpush1.msra.mxu0 %v552
      %586 = vmatprep.subr.mxu0 0.0
      %587 = vmatpush1.msra.mxu0 %v551
      %588 = vmatprep.subr.mxu0 0.0
      %589 = vmatpush1.msra.mxu0 %v550
      %590 = vmatprep.subr.mxu0 0.0
      %591 = vmatpush1.msra.mxu0 %v549
      %592 = vmatprep.subr.mxu0 0.0
      %593 = vmatpush1.msra.mxu0 %v548
      %594 = vmatprep.subr.mxu0 0.0
      %595 = vmatpush2.msra.mxu0 0.0
      %596 = vmatprep.subr.mxu0 0.0
      %597 = vmatpush2.msra.mxu0 0.0
      %598 = vmatprep.subr.mxu0 0.0
      %599 = vmatpush2.msra.mxu0 0.0
      %600 = vmatprep.subr.mxu0 0.0
      %601 = vmatpush2.msra.mxu0 0.0
      %602 = vmatprep.subr.mxu0 0.0
      %603 = vmatpush2.msra.mxu0 0.0
      %604 = vmatprep.subr.mxu0 0.0
      %605 = vmatpush2.msra.mxu0 0.0
      %606 = vmatprep.subr.mxu0 0.0
      %607 = vmatpush2.msra.mxu0 0.0
      %608 = vmatprep.subr.mxu0 0.0
      %609 = vmatpush2.msra.mxu0 0.0
      %610 = vmatprep.subr.mxu0 0.0
      %611 = vmatpush2.msra.mxu0 0.0
      %612 = vmatprep.subr.mxu0 0.0
      %613 = vmatpush2.msra.mxu0 0.0
      %614 = vmatprep.subr.mxu0 0.0
      %615 = vmatpush2.msra.mxu0 0.0
      %616 = vmatprep.subr.mxu0 0.0
      %617 = vmatpush2.msra.mxu0 0.0
      %618 = vmatprep.subr.mxu0 0.0
      %619 = vmatpush2.msra.mxu0 0.0
      %620 = vmatprep.subr.mxu0 0.0
      %621 = vmatpush2.msra.mxu0 0.0
      %622 = vmatprep.subr.mxu0 0.0
      %623 = vmatpush2.msra.mxu0 0.0
      %624 = vmatprep.subr.mxu0 0.0
      %625 = vmatpush2.msra.mxu0 0.0
      %626 = vmatprep.mubr.f32.mxu0 0.0
      %627 = vmatmul.mubr.f32.gmra.mxu0 %v560
      %v628 = vpop.f32.mrf.mxu0
      %v629 = vadd.f32 %v557, %v628
      %v630 = vpop.f32.mrf.mxu0
      %631 = vdwg.mxu0
      %v632 = vmax.f32 %v629, 0.0
      %v633 = vrot.slane %v284, 7
      %v635 = vmul.f32 %v632, %v633
      %vm636 = vcmask 8192
      %v637 = vsel %vm636, %v635, 0.0
      %638 = vadd.xlane.f32.xlu0 %v637
      %v639 = vpop.xlane.xlu0 %638
      %640 = vrot.lane.b32.xlu0 %v557, 126
      %v641 = vpop.permute.xlu0 %640
      %v643 = vadd.f32 %v639, %v641
      %v644 = vsub.f32 0.0, %v643
      %v645 = vmul.f32 %v644, 1.442695
      %v646 = vpow.pop %v645
      %v647 = vadd.f32 %v646, 1.0
      %v648 = vrcp.pop %v647
      %v649 = vmul.f32 1.0, %v648
      %v651 = vunpack.c.l.b16 %v282
      %v652 = vpack.c.b16 %v651, %v651
      %653 = vrot.lane.b32.xlu0 %v652, 64
      %v654 = vpop.permute.xlu0 %653
      %v657 = vunpack.c.l.b16 %v280
      %v658 = vunpack.c.l.b16 %v281
      %v659 = vpack.c.b16 %v658, %v657
      %v661 = vshrl.u32 %v659, 16
      %v663 = vshll.u32 %v659, 16
      %v665 = vrot.slane %v663, 1
      %v666 = vor.u32 %v661, %v665
      %v669 = vsel %vm535, %v280, %v654
      %v671 = vld [vmem:[%s2] sm:$0xf]
      %v672 = vld [vmem:[%s2 + $0x4] sm:$0xf]
      %v673 = vld [vmem:[%s2 + $0x8] sm:$0xf]
      %v674 = vld [vmem:[%s2 + $0xc] sm:$0xf]
      %v675 = vld [vmem:[%s2 + $0x10] sm:$0xf]
      %v676 = vld [vmem:[%s2 + $0x14] sm:$0xf]
      %v677 = vld [vmem:[%s2 + $0x18] sm:$0xf]
      %v678 = vld [vmem:[%s2 + $0x1c] sm:$0xf]
      %v679 = vld [vmem:[%s2 + $0x20] sm:$0xf]
      %v680 = vld [vmem:[%s2 + $0x24] sm:$0xf]
      %v681 = vld [vmem:[%s2 + $0x28] sm:$0xf]
      %v682 = vld [vmem:[%s2 + $0x2c] sm:$0xf]
      %v683 = vld [vmem:[%s2 + $0x30] sm:$0xf]
      %v684 = vld [vmem:[%s2 + $0x34] sm:$0xf]
      %v685 = vld [vmem:[%s2 + $0x38] sm:$0xf]
      %v686 = vld [vmem:[%s2 + $0x3c] sm:$0xf]
      %v687 = vld [vmem:[%s2 + $0x40] sm:$0xf]
      %v688 = vld [vmem:[%s2 + $0x44] sm:$0xf]
      %v689 = vld [vmem:[%s2 + $0x48] sm:$0xf]
      %v690 = vld [vmem:[%s2 + $0x4c] sm:$0xf]
      %v691 = vld [vmem:[%s2 + $0x50] sm:$0xf]
      %v692 = vld [vmem:[%s2 + $0x54] sm:$0xf]
      %v693 = vld [vmem:[%s2 + $0x58] sm:$0xf]
      %v694 = vld [vmem:[%s2 + $0x5c] sm:$0xf]
      %v719 = vunpack.c.l.b16 %v671
      %v720 = vunpack.c.l.b16 %v672
      %v721 = vunpack.c.l.b16 %v673
      %v722 = vunpack.c.l.b16 %v674
      %v723 = vunpack.c.l.b16 %v675
      %v724 = vunpack.c.l.b16 %v676
      %v725 = vunpack.c.l.b16 %v677
      %v726 = vunpack.c.l.b16 %v678
      %v727 = vunpack.c.l.b16 %v679
      %v728 = vunpack.c.l.b16 %v680
      %v729 = vunpack.c.l.b16 %v681
      %v730 = vunpack.c.l.b16 %v682
      %v731 = vunpack.c.l.b16 %v683
      %v732 = vunpack.c.l.b16 %v684
      %v733 = vunpack.c.l.b16 %v685
      %v734 = vunpack.c.l.b16 %v686
      %v735 = vunpack.c.l.b16 %v687
      %v736 = vunpack.c.l.b16 %v688
      %v737 = vunpack.c.l.b16 %v689
      %v738 = vunpack.c.l.b16 %v690
      %v739 = vunpack.c.l.b16 %v691
      %v740 = vunpack.c.l.b16 %v692
      %v741 = vunpack.c.l.b16 %v693
      %v742 = vunpack.c.l.b16 %v694
      %v743 = vpack.c.b16 %v720, %v719
      %v744 = vpack.c.b16 %v722, %v721
      %v745 = vpack.c.b16 %v724, %v723
      %v746 = vpack.c.b16 %v726, %v725
      %v747 = vpack.c.b16 %v728, %v727
      %v748 = vpack.c.b16 %v730, %v729
      %v749 = vpack.c.b16 %v732, %v731
      %v750 = vpack.c.b16 %v734, %v733
      %v751 = vpack.c.b16 %v736, %v735
      %v752 = vpack.c.b16 %v738, %v737
      %v753 = vpack.c.b16 %v740, %v739
      %v754 = vpack.c.b16 %v742, %v741
      %v768 = vsel %vm535, %v666, 0
      %770 = vmatprep.subr.bf16.mxu0 0
      %771 = vmatpush1.bf16.msra.mxu0 %v750
      %772 = vmatprep.subr.bf16.mxu0 0
      %773 = vmatpush1.bf16.msra.mxu0 %v749
      %774 = vmatprep.subr.bf16.mxu0 0
      %775 = vmatpush1.bf16.msra.mxu0 %v748
      %776 = vmatprep.subr.bf16.mxu0 0
      %777 = vmatpush1.bf16.msra.mxu0 %v747
      %778 = vmatprep.subr.bf16.mxu0 0
      %779 = vmatpush1.bf16.msra.mxu0 %v746
      %780 = vmatprep.subr.bf16.mxu0 0
      %781 = vmatpush1.bf16.msra.mxu0 %v745
      %782 = vmatprep.subr.bf16.mxu0 0
      %783 = vmatpush1.bf16.msra.mxu0 %v744
      %784 = vmatprep.subr.bf16.mxu0 0
      %785 = vmatpush1.bf16.msra.mxu0 %v743
      %786 = vmatprep.subr.bf16.mxu0 0
      %787 = vmatpush2.bf16.msra.mxu0 0
      %788 = vmatprep.subr.bf16.mxu0 0
      %789 = vmatpush2.bf16.msra.mxu0 0
      %790 = vmatprep.subr.bf16.mxu0 0
      %791 = vmatpush2.bf16.msra.mxu0 0
      %792 = vmatprep.subr.bf16.mxu0 0
      %793 = vmatpush2.bf16.msra.mxu0 0
      %794 = vmatprep.subr.bf16.mxu0 0
      %795 = vmatpush2.bf16.msra.mxu0 %v754
      %796 = vmatprep.subr.bf16.mxu0 0
      %797 = vmatpush2.bf16.msra.mxu0 %v753
      %798 = vmatprep.subr.bf16.mxu0 0
      %799 = vmatpush2.bf16.msra.mxu0 %v752
      %800 = vmatprep.subr.bf16.mxu0 0
      %801 = vmatpush2.bf16.msra.mxu0 %v751
      %802 = vmatprep.mubr.bf16.mxu0 %v768
      %803 = vmatmul.mubr.bf16.gmra.mxu0 %v669
      %v804 = vpop.f32.mrf.mxu0
      %v805 = vadd.f32 0.0, %v804
      %v806 = vpop.f32.mrf.mxu0
      %v807 = vpop.f32.mrf.mxu0
      %v808 = vpop.f32.mrf.mxu0
      %809 = vdwg.mxu0
      %811 = vset.pattern.permute.xlu0 0
      %812 = vperm.xlu0 %811, %v649
      %v813 = vpop.permute.xlu0 %812
      %v815 = vmul.f32 %v284, %v813
      %v816 = vlaneseq
      %v817 = vshrl.u32 %v816, 7
      %v818 = vsub.s32 0, %v817
      %v819 = vrot.slane %v815, %v818
      %v820 = vmul.f32 %v805, %v819
      %v821 = vlaneseq
      %v822 = vshrl.u32 %v821, 7
      %v823 = vsub.s32 1, %v822
      %v824 = vrot.slane %v284, %v823
      %v825 = vadd.f32 %v820, %v824
      %v826 = vmax.f32 %v825, 0.0
      %v827 = vpack.c.bf16 %v826, %v826
      %v829 = vshrl.u32 %v827, 16
      %v831 = vshll.u32 %v827, 16
      %v833 = vrot.slane %v831, 1
      %v834 = vor.u32 %v829, %v833
      %vm836 = vcmask 1043456
      %vm837 = vsmask.f32 3328
      %vm838 = vmand %vm836, %vm837
      %v839 = vsel %vm838, %v834, 0
      %v840 = vld [vmem:[%s3] sm:$0xf]
      %v841 = vld [vmem:[%s3 + $0x4] sm:$0xf]
      %v842 = vld [vmem:[%s3 + $0x8] sm:$0xf]
      %v843 = vld [vmem:[%s3 + $0xc] sm:$0xf]
      %v844 = vld [vmem:[%s3 + $0x10] sm:$0xf]
      %v845 = vld [vmem:[%s3 + $0x14] sm:$0xf]
      %v846 = vld [vmem:[%s3 + $0x18] sm:$0xf]
      %v847 = vld [vmem:[%s3 + $0x1c] sm:$0xf]
      %v848 = vld [vmem:[%s3 + $0x20] sm:$0xf]
      %v849 = vld [vmem:[%s3 + $0x24] sm:$0xf]
      %v850 = vld [vmem:[%s3 + $0x28] sm:$0xf]
      %v851 = vld [vmem:[%s3 + $0x2c] sm:$0xf]
      %v852 = vld [vmem:[%s3 + $0x30] sm:$0xf]
      %v853 = vld [vmem:[%s3 + $0x34] sm:$0xf]
      %v854 = vld [vmem:[%s3 + $0x38] sm:$0xf]
      %v855 = vld [vmem:[%s3 + $0x3c] sm:$0xf]
      %v872 = vunpack.c.l.b16 %v840
      %v873 = vunpack.c.l.b16 %v841
      %v874 = vunpack.c.l.b16 %v842
      %v875 = vunpack.c.l.b16 %v843
      %v876 = vunpack.c.l.b16 %v844
      %v877 = vunpack.c.l.b16 %v845
      %v878 = vunpack.c.l.b16 %v846
      %v879 = vunpack.c.l.b16 %v847
      %v880 = vunpack.c.l.b16 %v848
      %v881 = vunpack.c.l.b16 %v849
      %v882 = vunpack.c.l.b16 %v850
      %v883 = vunpack.c.l.b16 %v851
      %v884 = vunpack.c.l.b16 %v852
      %v885 = vunpack.c.l.b16 %v853
      %v886 = vunpack.c.l.b16 %v854
      %v887 = vunpack.c.l.b16 %v855
      %v888 = vpack.c.b16 %v873, %v872
      %v889 = vpack.c.b16 %v875, %v874
      %v890 = vpack.c.b16 %v877, %v876
      %v891 = vpack.c.b16 %v879, %v878
      %v892 = vpack.c.b16 %v881, %v880
      %v893 = vpack.c.b16 %v883, %v882
      %v894 = vpack.c.b16 %v885, %v884
      %v895 = vpack.c.b16 %v887, %v886
      %904 = vmatprep.subr.bf16.mxu0 0
      %905 = vmatpush1.bf16.msra.mxu0 %v895
      %906 = vmatprep.subr.bf16.mxu0 0
      %907 = vmatpush1.bf16.msra.mxu0 %v894
      %908 = vmatprep.subr.bf16.mxu0 0
      %909 = vmatpush1.bf16.msra.mxu0 %v893
      %910 = vmatprep.subr.bf16.mxu0 0
      %911 = vmatpush1.bf16.msra.mxu0 %v892
      %912 = vmatprep.subr.bf16.mxu0 0
      %913 = vmatpush1.bf16.msra.mxu0 %v891
      %914 = vmatprep.subr.bf16.mxu0 0
      %915 = vmatpush1.bf16.msra.mxu0 %v890
      %916 = vmatprep.subr.bf16.mxu0 0
      %917 = vmatpush1.bf16.msra.mxu0 %v889
      %918 = vmatprep.subr.bf16.mxu0 0
      %919 = vmatpush1.bf16.msra.mxu0 %v888
      %920 = vmatprep.subr.bf16.mxu0 0
      %921 = vmatpush2.bf16.msra.mxu0 0
      %922 = vmatprep.subr.bf16.mxu0 0
      %923 = vmatpush2.bf16.msra.mxu0 0
      %924 = vmatprep.subr.bf16.mxu0 0
      %925 = vmatpush2.bf16.msra.mxu0 0
      %926 = vmatprep.subr.bf16.mxu0 0
      %927 = vmatpush2.bf16.msra.mxu0 0
      %928 = vmatprep.subr.bf16.mxu0 0
      %929 = vmatpush2.bf16.msra.mxu0 0
      %930 = vmatprep.subr.bf16.mxu0 0
      %931 = vmatpush2.bf16.msra.mxu0 0
      %932 = vmatprep.subr.bf16.mxu0 0
      %933 = vmatpush2.bf16.msra.mxu0 0
      %934 = vmatprep.subr.bf16.mxu0 0
      %935 = vmatpush2.bf16.msra.mxu0 0
      %936 = vmatprep.mubr.bf16.mxu0 0
      %937 = vmatmul.mubr.bf16.gmra.mxu0 %v827
      %v938 = vpop.f32.mrf.mxu0
      %v939 = vadd.f32 0.0, %v938
      %v940 = vpop.f32.mrf.mxu0
      %v941 = vpop.f32.mrf.mxu0
      %v942 = vpop.f32.mrf.mxu0
      %943 = vdwg.mxu0
      %v944 = vld [vmem:[%s4] sm:$0xf]
      %v945 = vld [vmem:[%s4 + $0x4] sm:$0xf]
      %v946 = vld [vmem:[%s4 + $0x8] sm:$0xf]
      %v947 = vld [vmem:[%s4 + $0xc] sm:$0xf]
      %v948 = vld [vmem:[%s4 + $0x10] sm:$0xf]
      %v949 = vld [vmem:[%s4 + $0x14] sm:$0xf]
      %v950 = vld [vmem:[%s4 + $0x18] sm:$0xf]
      %v951 = vld [vmem:[%s4 + $0x1c] sm:$0xf]
      %v952 = vld [vmem:[%s4 + $0x20] sm:$0xf]
      %v953 = vld [vmem:[%s4 + $0x24] sm:$0xf]
      %v954 = vld [vmem:[%s4 + $0x28] sm:$0xf]
      %v955 = vld [vmem:[%s4 + $0x2c] sm:$0xf]
      %v956 = vld [vmem:[%s4 + $0x30] sm:$0xf]
      %v957 = vld [vmem:[%s4 + $0x34] sm:$0xf]
      %v958 = vld [vmem:[%s4 + $0x38] sm:$0xf]
      %v959 = vld [vmem:[%s4 + $0x3c] sm:$0xf]
      %v960 = vld [vmem:[%s4 + $0x40] sm:$0xf]
      %v961 = vld [vmem:[%s4 + $0x44] sm:$0xf]
      %v962 = vld [vmem:[%s4 + $0x48] sm:$0xf]
      %v963 = vld [vmem:[%s4 + $0x4c] sm:$0xf]
      %v964 = vld [vmem:[%s4 + $0x50] sm:$0xf]
      %v965 = vld [vmem:[%s4 + $0x54] sm:$0xf]
      %v966 = vld [vmem:[%s4 + $0x58] sm:$0xf]
      %v967 = vld [vmem:[%s4 + $0x5c] sm:$0xf]
      %v968 = vld [vmem:[%s4 + $0x60] sm:$0xf]
      %v969 = vld [vmem:[%s4 + $0x64] sm:$0xf]
      %v970 = vld [vmem:[%s4 + $0x68] sm:$0xf]
      %v971 = vld [vmem:[%s4 + $0x6c] sm:$0xf]
      %v972 = vld [vmem:[%s4 + $0x70] sm:$0xf]
      %v973 = vld [vmem:[%s4 + $0x74] sm:$0xf]
      %v974 = vld [vmem:[%s4 + $0x78] sm:$0xf]
      %v975 = vld [vmem:[%s4 + $0x7c] sm:$0xf]
      %v1008 = vunpack.c.l.b16 %v944
      %v1009 = vunpack.c.l.b16 %v945
      %v1010 = vunpack.c.l.b16 %v946
      %v1011 = vunpack.c.l.b16 %v947
      %v1012 = vunpack.c.l.b16 %v948
      %v1013 = vunpack.c.l.b16 %v949
      %v1014 = vunpack.c.l.b16 %v950
      %v1015 = vunpack.c.l.b16 %v951
      %v1016 = vunpack.c.l.b16 %v952
      %v1017 = vunpack.c.l.b16 %v953
      %v1018 = vunpack.c.l.b16 %v954
      %v1019 = vunpack.c.l.b16 %v955
      %v1020 = vunpack.c.l.b16 %v956
      %v1021 = vunpack.c.l.b16 %v957
      %v1022 = vunpack.c.l.b16 %v958
      %v1023 = vunpack.c.l.b16 %v959
      %v1024 = vunpack.c.l.b16 %v960
      %v1025 = vunpack.c.l.b16 %v961
      %v1026 = vunpack.c.l.b16 %v962
      %v1027 = vunpack.c.l.b16 %v963
      %v1028 = vunpack.c.l.b16 %v964
      %v1029 = vunpack.c.l.b16 %v965
      %v1030 = vunpack.c.l.b16 %v966
      %v1031 = vunpack.c.l.b16 %v967
      %v1032 = vunpack.c.l.b16 %v968
      %v1033 = vunpack.c.l.b16 %v969
      %v1034 = vunpack.c.l.b16 %v970
      %v1035 = vunpack.c.l.b16 %v971
      %v1036 = vunpack.c.l.b16 %v972
      %v1037 = vunpack.c.l.b16 %v973
      %v1038 = vunpack.c.l.b16 %v974
      %v1039 = vunpack.c.l.b16 %v975
      %v1040 = vpack.c.b16 %v1009, %v1008
      %v1041 = vpack.c.b16 %v1011, %v1010
      %v1042 = vpack.c.b16 %v1013, %v1012
      %v1043 = vpack.c.b16 %v1015, %v1014
      %v1044 = vpack.c.b16 %v1017, %v1016
      %v1045 = vpack.c.b16 %v1019, %v1018
      %v1046 = vpack.c.b16 %v1021, %v1020
      %v1047 = vpack.c.b16 %v1023, %v1022
      %v1048 = vpack.c.b16 %v1025, %v1024
      %v1049 = vpack.c.b16 %v1027, %v1026
      %v1050 = vpack.c.b16 %v1029, %v1028
      %v1051 = vpack.c.b16 %v1031, %v1030
      %v1052 = vpack.c.b16 %v1033, %v1032
      %v1053 = vpack.c.b16 %v1035, %v1034
      %v1054 = vpack.c.b16 %v1037, %v1036
      %v1055 = vpack.c.b16 %v1039, %v1038
      %1072 = vmatprep.subr.bf16.mxu0 0
      %1073 = vmatpush1.bf16.msra.mxu0 %v1047
      %1074 = vmatprep.subr.bf16.mxu0 0
      %1075 = vmatpush1.bf16.msra.mxu0 %v1046
      %1076 = vmatprep.subr.bf16.mxu0 0
      %1077 = vmatpush1.bf16.msra.mxu0 %v1045
      %1078 = vmatprep.subr.bf16.mxu0 0
      %1079 = vmatpush1.bf16.msra.mxu0 %v1044
      %1080 = vmatprep.subr.bf16.mxu0 0
      %1081 = vmatpush1.bf16.msra.mxu0 %v1043
      %1082 = vmatprep.subr.bf16.mxu0 0
      %1083 = vmatpush1.bf16.msra.mxu0 %v1042
      %1084 = vmatprep.subr.bf16.mxu0 0
      %1085 = vmatpush1.bf16.msra.mxu0 %v1041
      %1086 = vmatprep.subr.bf16.mxu0 0
      %1087 = vmatpush1.bf16.msra.mxu0 %v1040
      %1088 = vmatprep.subr.bf16.mxu0 0
      %1089 = vmatpush2.bf16.msra.mxu0 %v1055
      %1090 = vmatprep.subr.bf16.mxu0 0
      %1091 = vmatpush2.bf16.msra.mxu0 %v1054
      %1092 = vmatprep.subr.bf16.mxu0 0
      %1093 = vmatpush2.bf16.msra.mxu0 %v1053
      %1094 = vmatprep.subr.bf16.mxu0 0
      %1095 = vmatpush2.bf16.msra.mxu0 %v1052
      %1096 = vmatprep.subr.bf16.mxu0 0
      %1097 = vmatpush2.bf16.msra.mxu0 %v1051
      %1098 = vmatprep.subr.bf16.mxu0 0
      %1099 = vmatpush2.bf16.msra.mxu0 %v1050
      %1100 = vmatprep.subr.bf16.mxu0 0
      %1101 = vmatpush2.bf16.msra.mxu0 %v1049
      %1102 = vmatprep.subr.bf16.mxu0 0
      %1103 = vmatpush2.bf16.msra.mxu0 %v1048
      %1104 = vmatprep.mubr.bf16.mxu0 %v827
      %1105 = vmatmul.mubr.bf16.gmra.mxu0 %v839
      %v1106 = vpop.f32.mrf.mxu0
      %v1107 = vadd.f32 0.0, %v1106
      %v1108 = vpop.f32.mrf.mxu0
      %v1109 = vpop.f32.mrf.mxu0
      %v1110 = vpop.f32.mrf.mxu0
      %1111 = vdwg.mxu0
      %v1112 = vlaneseq
      %v1113 = vshrl.u32 %v1112, 7
      %v1114 = vsub.s32 2, %v1113
      %v1115 = vrot.slane %v284, %v1114
      %v1116 = vmul.f32 %v939, %v1115
      %v1117 = vlaneseq
      %v1118 = vshrl.u32 %v1117, 7
      %v1119 = vsub.s32 3, %v1118
      %v1120 = vrot.slane %v284, %v1119
      %v1121 = vadd.f32 %v1116, %v1120
      %v1122 = vmax.f32 %v1121, 0.0
      %v1123 = vpack.c.bf16 %v1122, %v1122
      %v1124 = vmul.f32 %v1107, %v1115
      %v1125 = vadd.f32 %v1124, %v1120
      %v1126 = vmax.f32 %v1125, 0.0
      %v1127 = vpack.c.bf16 %v1126, %v1126
      %v1129 = vshrl.u32 %v1127, 16
      %v1131 = vrot.slane %v1129, 7
      %v1132 = vshll.u32 %v1127, 16
      %v1134 = vor.u32 %v1131, %v1132
      %vm1136 = vcmask 1040384
      %vm1137 = vsmask.f32 256
      %vm1138 = vmand %vm1136, %vm1137
      %v1139 = vsel %vm1138, 0, %v1134
      %v1141 = vshrl.u32 %v1123, 16
      %v1143 = vshll.u32 %v1123, 16
      %v1145 = vrot.slane %v1143, 1
      %v1146 = vor.u32 %v1141, %v1145
      %v1148 = vsel %vm838, %v1146, 0
      %v1152 = vrot.slane %v1123, 4
      %v1153 = vrot.slane %v1127, 4
      %v1154 = vrot.slane %v1148, 4
      %vm1155 = vcmask 1043456
      %v1158 = vsel %vm1155, %v1139, %v1152
      %v1161 = vsel %vm1155, %v1123, %v1153
      %v1164 = vsel %vm1155, %v1127, %v1154
      %v1166 = vld [vmem:[%s5] sm:$0xf]
      %v1167 = vld [vmem:[%s5 + $0x4] sm:$0xf]
      %v1168 = vld [vmem:[%s5 + $0x8] sm:$0xf]
      %v1169 = vld [vmem:[%s5 + $0xc] sm:$0xf]
      %v1170 = vld [vmem:[%s5 + $0x10] sm:$0xf]
      %v1171 = vld [vmem:[%s5 + $0x14] sm:$0xf]
      %v1172 = vld [vmem:[%s5 + $0x18] sm:$0xf]
      %v1173 = vld [vmem:[%s5 + $0x1c] sm:$0xf]
      %v1174 = vld [vmem:[%s5 + $0x20] sm:$0xf]
      %v1175 = vld [vmem:[%s5 + $0x24] sm:$0xf]
      %v1176 = vld [vmem:[%s5 + $0x28] sm:$0xf]
      %v1177 = vld [vmem:[%s5 + $0x2c] sm:$0xf]
      %v1178 = vld [vmem:[%s5 + $0x30] sm:$0xf]
      %v1179 = vld [vmem:[%s5 + $0x34] sm:$0xf]
      %v1180 = vld [vmem:[%s5 + $0x38] sm:$0xf]
      %v1181 = vld [vmem:[%s5 + $0x3c] sm:$0xf]
      %v1182 = vld [vmem:[%s5 + $0x40] sm:$0xf]
      %v1183 = vld [vmem:[%s5 + $0x44] sm:$0xf]
      %v1184 = vld [vmem:[%s5 + $0x48] sm:$0xf]
      %v1185 = vld [vmem:[%s5 + $0x4c] sm:$0xf]
      %v1186 = vld [vmem:[%s5 + $0x50] sm:$0xf]
      %v1187 = vld [vmem:[%s5 + $0x54] sm:$0xf]
      %v1188 = vld [vmem:[%s5 + $0x58] sm:$0xf]
      %v1189 = vld [vmem:[%s5 + $0x5c] sm:$0xf]
      %v1190 = vld [vmem:[%s5 + $0x60] sm:$0xf]
      %v1191 = vld [vmem:[%s5 + $0x64] sm:$0xf]
      %v1192 = vld [vmem:[%s5 + $0x68] sm:$0xf]
      %v1193 = vld [vmem:[%s5 + $0x6c] sm:$0xf]
      %v1194 = vld [vmem:[%s5 + $0x70] sm:$0xf]
      %v1195 = vld [vmem:[%s5 + $0x74] sm:$0xf]
      %v1196 = vld [vmem:[%s5 + $0x78] sm:$0xf]
      %v1197 = vld [vmem:[%s5 + $0x7c] sm:$0xf]
      %v1198 = vld [vmem:[%s5 + $0x80] sm:$0xf]
      %v1199 = vld [vmem:[%s5 + $0x84] sm:$0xf]
      %v1200 = vld [vmem:[%s5 + $0x88] sm:$0xf]
      %v1201 = vld [vmem:[%s5 + $0x8c] sm:$0xf]
      %v1202 = vld [vmem:[%s5 + $0x90] sm:$0xf]
      %v1203 = vld [vmem:[%s5 + $0x94] sm:$0xf]
      %v1204 = vld [vmem:[%s5 + $0x98] sm:$0xf]
      %v1205 = vld [vmem:[%s5 + $0x9c] sm:$0xf]
      %v1206 = vld [vmem:[%s5 + $0xa0] sm:$0xf]
      %v1207 = vld [vmem:[%s5 + $0xa4] sm:$0xf]
      %v1208 = vld [vmem:[%s5 + $0xa8] sm:$0xf]
      %v1209 = vld [vmem:[%s5 + $0xac] sm:$0xf]
      %v1210 = vld [vmem:[%s5 + $0xb0] sm:$0xf]
      %v1211 = vld [vmem:[%s5 + $0xb4] sm:$0xf]
      %v1212 = vld [vmem:[%s5 + $0xb8] sm:$0xf]
      %v1213 = vld [vmem:[%s5 + $0xbc] sm:$0xf]
      %v1262 = vunpack.c.l.b16 %v1166
      %v1263 = vunpack.c.l.b16 %v1167
      %v1264 = vunpack.c.l.b16 %v1168
      %v1265 = vunpack.c.l.b16 %v1169
      %v1266 = vunpack.c.l.b16 %v1170
      %v1267 = vunpack.c.l.b16 %v1171
      %v1268 = vunpack.c.l.b16 %v1172
      %v1269 = vunpack.c.l.b16 %v1173
      %v1270 = vunpack.c.l.b16 %v1174
      %v1271 = vunpack.c.l.b16 %v1175
      %v1272 = vunpack.c.l.b16 %v1176
      %v1273 = vunpack.c.l.b16 %v1177
      %v1274 = vunpack.c.l.b16 %v1178
      %v1275 = vunpack.c.l.b16 %v1179
      %v1276 = vunpack.c.l.b16 %v1180
      %v1277 = vunpack.c.l.b16 %v1181
      %v1278 = vunpack.c.l.b16 %v1182
      %v1279 = vunpack.c.l.b16 %v1183
      %v1280 = vunpack.c.l.b16 %v1184
      %v1281 = vunpack.c.l.b16 %v1185
      %v1282 = vunpack.c.l.b16 %v1186
      %v1283 = vunpack.c.l.b16 %v1187
      %v1284 = vunpack.c.l.b16 %v1188
      %v1285 = vunpack.c.l.b16 %v1189
      %v1286 = vunpack.c.l.b16 %v1190
      %v1287 = vunpack.c.l.b16 %v1191
      %v1288 = vunpack.c.l.b16 %v1192
      %v1289 = vunpack.c.l.b16 %v1193
      %v1290 = vunpack.c.l.b16 %v1194
      %v1291 = vunpack.c.l.b16 %v1195
      %v1292 = vunpack.c.l.b16 %v1196
      %v1293 = vunpack.c.l.b16 %v1197
      %v1294 = vunpack.c.l.b16 %v1198
      %v1295 = vunpack.c.l.b16 %v1199
      %v1296 = vunpack.c.l.b16 %v1200
      %v1297 = vunpack.c.l.b16 %v1201
      %v1298 = vunpack.c.l.b16 %v1202
      %v1299 = vunpack.c.l.b16 %v1203
      %v1300 = vunpack.c.l.b16 %v1204
      %v1301 = vunpack.c.l.b16 %v1205
      %v1302 = vunpack.c.l.b16 %v1206
      %v1303 = vunpack.c.l.b16 %v1207
      %v1304 = vunpack.c.l.b16 %v1208
      %v1305 = vunpack.c.l.b16 %v1209
      %v1306 = vunpack.c.l.b16 %v1210
      %v1307 = vunpack.c.l.b16 %v1211
      %v1308 = vunpack.c.l.b16 %v1212
      %v1309 = vunpack.c.l.b16 %v1213
      %v1310 = vpack.c.b16 %v1263, %v1262
      %v1311 = vpack.c.b16 %v1265, %v1264
      %v1312 = vpack.c.b16 %v1267, %v1266
      %v1313 = vpack.c.b16 %v1269, %v1268
      %v1314 = vpack.c.b16 %v1271, %v1270
      %v1315 = vpack.c.b16 %v1273, %v1272
      %v1316 = vpack.c.b16 %v1275, %v1274
      %v1317 = vpack.c.b16 %v1277, %v1276
      %v1318 = vpack.c.b16 %v1279, %v1278
      %v1319 = vpack.c.b16 %v1281, %v1280
      %v1320 = vpack.c.b16 %v1283, %v1282
      %v1321 = vpack.c.b16 %v1285, %v1284
      %v1322 = vpack.c.b16 %v1287, %v1286
      %v1323 = vpack.c.b16 %v1289, %v1288
      %v1324 = vpack.c.b16 %v1291, %v1290
      %v1325 = vpack.c.b16 %v1293, %v1292
      %v1326 = vpack.c.b16 %v1295, %v1294
      %v1327 = vpack.c.b16 %v1297, %v1296
      %v1328 = vpack.c.b16 %v1299, %v1298
      %v1329 = vpack.c.b16 %v1301, %v1300
      %v1330 = vpack.c.b16 %v1303, %v1302
      %v1331 = vpack.c.b16 %v1305, %v1304
      %v1332 = vpack.c.b16 %v1307, %v1306
      %v1333 = vpack.c.b16 %v1309, %v1308
      %1358 = vmatprep.subr.bf16.mxu0 0
      %1359 = vmatpush1.bf16.msra.mxu0 %v1317
      %1360 = vmatprep.subr.bf16.mxu0 0
      %1361 = vmatpush1.bf16.msra.mxu0 %v1316
      %1362 = vmatprep.subr.bf16.mxu0 0
      %1363 = vmatpush1.bf16.msra.mxu0 %v1315
      %1364 = vmatprep.subr.bf16.mxu0 0
      %1365 = vmatpush1.bf16.msra.mxu0 %v1314
      %1366 = vmatprep.subr.bf16.mxu0 0
      %1367 = vmatpush1.bf16.msra.mxu0 %v1313
      %1368 = vmatprep.subr.bf16.mxu0 0
      %1369 = vmatpush1.bf16.msra.mxu0 %v1312
      %1370 = vmatprep.subr.bf16.mxu0 0
      %1371 = vmatpush1.bf16.msra.mxu0 %v1311
      %1372 = vmatprep.subr.bf16.mxu0 0
      %1373 = vmatpush1.bf16.msra.mxu0 %v1310
      %1374 = vmatprep.subr.bf16.mxu0 0
      %1375 = vmatpush2.bf16.msra.mxu0 %v1325
      %1376 = vmatprep.subr.bf16.mxu0 0
      %1377 = vmatpush2.bf16.msra.mxu0 %v1324
      %1378 = vmatprep.subr.bf16.mxu0 0
      %1379 = vmatpush2.bf16.msra.mxu0 %v1323
      %1380 = vmatprep.subr.bf16.mxu0 0
      %1381 = vmatpush2.bf16.msra.mxu0 %v1322
      %1382 = vmatprep.subr.bf16.mxu0 0
      %1383 = vmatpush2.bf16.msra.mxu0 %v1321
      %1384 = vmatprep.subr.bf16.mxu0 0
      %1385 = vmatpush2.bf16.msra.mxu0 %v1320
      %1386 = vmatprep.subr.bf16.mxu0 0
      %1387 = vmatpush2.bf16.msra.mxu0 %v1319
      %1388 = vmatprep.subr.bf16.mxu0 0
      %1389 = vmatpush2.bf16.msra.mxu0 %v1318
      %1390 = vmatprep.mubr.bf16.mxu0 %v1161
      %1391 = vmatmul.mubr.bf16.gmra.mxu0 %v1158
      %v1392 = vpop.f32.mrf.mxu0
      %v1393 = vadd.f32 0.0, %v1392
      %v1394 = vpop.f32.mrf.mxu0
      %v1395 = vpop.f32.mrf.mxu0
      %v1396 = vadd.f32 0.0, %v1395
      %v1397 = vpop.f32.mrf.mxu0
      %1398 = vdwg.mxu0
      %1399 = vmatprep.subr.bf16.mxu0 0
      %1400 = vmatpush1.bf16.msra.mxu0 %v1333
      %1401 = vmatprep.subr.bf16.mxu0 0
      %1402 = vmatpush1.bf16.msra.mxu0 %v1332
      %1403 = vmatprep.subr.bf16.mxu0 0
      %1404 = vmatpush1.bf16.msra.mxu0 %v1331
      %1405 = vmatprep.subr.bf16.mxu0 0
      %1406 = vmatpush1.bf16.msra.mxu0 %v1330
      %1407 = vmatprep.subr.bf16.mxu0 0
      %1408 = vmatpush1.bf16.msra.mxu0 %v1329
      %1409 = vmatprep.subr.bf16.mxu0 0
      %1410 = vmatpush1.bf16.msra.mxu0 %v1328
      %1411 = vmatprep.subr.bf16.mxu0 0
      %1412 = vmatpush1.bf16.msra.mxu0 %v1327
      %1413 = vmatprep.subr.bf16.mxu0 0
      %1414 = vmatpush1.bf16.msra.mxu0 %v1326
      %1415 = vmatprep.subr.bf16.mxu0 0
      %1416 = vmatpush2.bf16.msra.mxu0 0
      %1417 = vmatprep.subr.bf16.mxu0 0
      %1418 = vmatpush2.bf16.msra.mxu0 0
      %1419 = vmatprep.subr.bf16.mxu0 0
      %1420 = vmatpush2.bf16.msra.mxu0 0
      %1421 = vmatprep.subr.bf16.mxu0 0
      %1422 = vmatpush2.bf16.msra.mxu0 0
      %1423 = vmatprep.subr.bf16.mxu0 0
      %1424 = vmatpush2.bf16.msra.mxu0 0
      %1425 = vmatprep.subr.bf16.mxu0 0
      %1426 = vmatpush2.bf16.msra.mxu0 0
      %1427 = vmatprep.subr.bf16.mxu0 0
      %1428 = vmatpush2.bf16.msra.mxu0 0
      %1429 = vmatprep.subr.bf16.mxu0 0
      %1430 = vmatpush2.bf16.msra.mxu0 0
      %1431 = vmatprep.mubr.bf16.mxu0 0
      %1432 = vmatmul.mubr.bf16.gmra.mxu0 %v1164
      %v1433 = vpop.f32.mrf.mxu0
      %v1434 = vadd.f32 %v1393, %v1433
      %v1435 = vpop.f32.mrf.mxu0
      %v1436 = vpop.f32.mrf.mxu0
      %v1437 = vadd.f32 %v1396, %v1436
      %v1438 = vpop.f32.mrf.mxu0
      %1439 = vdwg.mxu0
      %v1440 = vlaneseq
      %v1441 = vshrl.u32 %v1440, 7
      %v1442 = vsub.s32 4, %v1441
      %v1443 = vrot.slane %v284, %v1442
      %v1444 = vmul.f32 %v1434, %v1443
      %v1445 = vmul.f32 %v1437, %v1443
      %v1446 = vlaneseq
      %v1447 = vshrl.u32 %v1446, 7
      %v1448 = vsub.s32 5, %v1447
      %v1449 = vrot.slane %v284, %v1448
      %v1450 = vadd.f32 %v1444, %v1449
      %v1451 = vadd.f32 %v1445, %v1449
      %v1452 = vmax.f32 %v1450, 0.0
      %v1453 = vmax.f32 %v1451, 0.0
      %1454 = vst [vmem:[%s278] sm:$0xff] %v1452
      %1455 = vst [vmem:[%s278 + $0x8] sm:$0xff] %v1453
      %p1456 = scmp.lt.s32.totalorder %s18, 1
      %s1457 = scalar_select %p1456, %s18, 1
      %s1458 = smul.addr %s1457, 2
      %s1459 = smul.addr %s1458, 8
      %s1460 = scalar_lea.vmem %s7, %s1459
      // Predicated region
      $region49: #{conv_alpha_block.1} parent=47 // pred_check
        %p1461 = pneg %p188
      $region50: #{conv_alpha_block.1} parent=47 // pred_check_branch
        %1463 = sbr.rel (%p1461) target = $region52
      $region51: #{conv_alpha_block.1} parent=47 // pred_region
        _
      $region52: #{conv_alpha_block.1} parent=47 // pred_fallthru
        _
    $region48: #{conv_alpha_block.1} parent=5 // pred_fallthru
      _
    %p1464 = scmp.le.s32.totalorder 2, %s13
    // Predicated region
    $region53: #{conv_alpha_block.1} parent=5 // pred_check
      %p1465 = pneg %p1464
    $region54: #{conv_alpha_block.1} parent=5 // pred_check_branch
      %1467 = sbr.rel (%p1465) target = $region56
    $region55: #{conv_alpha_block.1} parent=5 // pred_region
      %s1468 = ssub.s32 %s13, 2
      // Predicated region
      $region57: #{conv_alpha_block.1} parent=55 // pred_check
        %p1469 = pneg %p194
      $region58: #{conv_alpha_block.1} parent=55 // pred_check_branch
        %1471 = sbr.rel (%p1469) target = $region60
      $region59: #{conv_alpha_block.1} parent=55 // pred_region
        %p1472 = scmp.lt.s32.totalorder %s19, 1
        %s1473 = scalar_select %p1472, %s19, 1
        %s1474 = smul.addr %s1473, 2
        %s1475 = smul.addr %s1474, 8
        %s1476 = scalar_lea.vmem %s7, %s1475
      $region60: #{conv_alpha_block.1} parent=55 // pred_fallthru
        _
    $region56: #{conv_alpha_block.1} parent=5 // pred_fallthru
      _
  $region6: #{conv_alpha_block.1} parent=0 // loop_footer
    %s17 = sadd.s32 1, %s13
  $region7: #{conv_alpha_block.1} parent=0 // loop_footer_branch
    %12 = sbr.rel target = $region3
  $region8: #{conv_alpha_block.1} parent=0 // loop_exit
    _

</llo_original>
